<compile_context>
chip_gen: v7x
topology: tpu7x:2x2x1
jax: 0.10.0
libtpu: 0.0.40
codegen_flags: <defaults>
</compile_context>

<pallas_src>
import functools

import jax
import jax.numpy as jnp
import numpy as np
from jax.experimental import pallas as pl
from jax.experimental.pallas import tpu as pltpu

GROUP_CHANNELS = 16   # involution group_channels (TransInvNet default)
REDUCTION = 4         # involution reduction_ratio


# ----------------------------- Pallas kernel --------------------------------


def _inv2d_relu_kernel(xt_ref, w1_ref, bn1s_ref, bn1b_ref, w2_ref, b2_ref,
                       scale_ref, shift_ref, o_ref, *, K, TH, W, pad):
    """One (batch, row-tile) per grid step.

    xt_ref    : (1, TH+2p, W+2p, C) bf16   zero-padded input rows for this tile (+halo)
    w1_ref    : (C, C//4)      f32         conv1 1x1 weight (unfolded)
    bn1s_ref  : (1, C//4)      f32         BN1 scale   (gamma / sqrt(var+eps))
    bn1b_ref  : (1, C//4)      f32         BN1 shift   ((b1 - mean)*scale + beta)
    w2_ref    : (C//4, K*K*C)  f32         conv2 1x1 weight, group->channel expanded,
                                           columns laid out k-major / channel-minor
    b2_ref    : (1, K*K*C)     f32         conv2 bias, expanded the same way
    scale_ref : (1, C)         f32         outer BN scale
    shift_ref : (1, C)         f32         outer BN shift
    o_ref     : (1, TH*W, C)   f32         output rows for this tile
    """
    C = o_ref.shape[-1]
    N = TH * W

    # center (un-shifted) pixels of this tile -> (N, C), upcast bf16 -> f32
    xc = xt_ref[0, pad:pad + TH, pad:pad + W, :].reshape(N, C).astype(jnp.float32)

    # conv1 (1x1) -> BN1 (inference, elementwise scale/shift) -> ReLU        [MXU + VPU]
    h1 = jnp.dot(xc, w1_ref[...], preferred_element_type=jnp.float32)
    h1 = jnp.maximum(h1 * bn1s_ref[...] + bn1b_ref[...], 0.0)

    # conv2 (1x1) with the group->channel broadcast pre-folded into its columns:
    # per-pixel, per-channel involution weights, tap-major -> (N, K*K*C)      [MXU]
    wgt = jnp.dot(h1, w2_ref[...], preferred_element_type=jnp.float32) + b2_ref[...]

    # involution: weighted sum over the K*K neighborhood.  Each tap is a contiguous
    # lane slice of width C (multiple of 128) + one VPU FMA — no repeats / gathers.
    acc = None
    for ky in range(K):
        for kx in range(K):
            k = ky * K + kx
            if ky == pad and kx == pad:
                xs = xc                                       # reuse the center slice
            else:
                xs = xt_ref[0, ky:ky + TH, kx:kx + W, :].reshape(N, C)
                xs = xs.astype(jnp.float32)
            term = wgt[:, k * C:(k + 1) * C] * xs
            acc = term if acc is None else acc + term

    # outer BatchNorm (inference, folded) + ReLU
    o_ref[0] = jnp.maximum(acc * scale_ref[...] + shift_ref[...], 0.0)


# ------------------------------ wrapper --------------------------------------


def inv2d_relu(x_nchw, params, kernel_size=3, stride=1, row_tile=None):
    assert stride == 1, "stride > 1 not implemented"  # TODO(synk): strided path
    B, C, H, W = x_nchw.shape
    K = kernel_size
    KK = K * K
    pad = (K - 1) // 2
    GC = GROUP_CHANNELS
    assert C % GC == 0 and C % REDUCTION == 0
    G = C // GC
    Cr = C // REDUCTION
    eps = 1e-5

    # ---- row tiling: budget ~4 MiB f32 of per-step temporaries (input copy + acc +
    #      the (N, K*K*C) expanded-weight buffer); halo = 2*pad rows ----
    if row_tile is None:
        bytes_per_row = W * C * 4 * (KK + 3)
        target = max(1, (4 << 20) // bytes_per_row)
        cands = [d for d in range(1, H + 1) if H % d == 0 and d <= target]
        row_tile = max(cands) if cands else H
    TH = row_tile
    assert H % TH == 0, "row_tile must divide H"
    R = H // TH
    THp, Wp = TH + 2 * pad, W + 2 * pad

    # ---- input: NCHW -> NHWC, bf16 storage, one zero pad, overlapping row tiles ----
    x = jnp.transpose(x_nchw, (0, 2, 3, 1)).astype(jnp.bfloat16)          # (B,H,W,C)
    xp = jnp.pad(x, ((0, 0), (pad, pad), (pad, pad), (0, 0)))
    xt = jnp.stack([xp[:, r * TH:r * TH + THp] for r in range(R)], axis=1)
    xt = xt.reshape(B * R, THp, Wp, C)                                    # (B*R,THp,Wp,C)

    # ---- BN1 as elementwise scale/shift (conv1 bias folded into the shift) ----
    s1 = params["bn1_gamma"] / jnp.sqrt(params["bn1_var"] + eps)
    bn1b = (params["b1"] - params["bn1_mean"]) * s1 + params["bn1_beta"]

    # ---- conv2 columns: original layout g*KK + k  ->  expanded k*C + c, where the
    #      group-g column is duplicated over its GC channels (c // GC == g).  This
    #      folds the involution's group->channel broadcast into the MXU matmul. ----
    w2e = params["w2"].reshape(Cr, G, KK).transpose(0, 2, 1)              # (Cr, KK, G)
    w2e = jnp.repeat(w2e, GC, axis=2).reshape(Cr, KK * C)                 # (Cr, KK*C)
    b2e = params["b2"].reshape(G, KK).T                                   # (KK, G)
    b2e = jnp.repeat(b2e, GC, axis=1).reshape(KK * C)                     # (KK*C,)

    # ---- outer BN folded to per-channel scale / shift ----
    s3 = params["bn_gamma"] / jnp.sqrt(params["bn_var"] + eps)
    sh3 = params["bn_beta"] - params["bn_mean"] * s3

    kern = functools.partial(_inv2d_relu_kernel, K=K, TH=TH, W=W, pad=pad)
    out = pl.pallas_call(
        kern,
        out_shape=jax.ShapeDtypeStruct((B * R, TH * W, C), jnp.float32),
        grid=(B * R,),
        in_specs=[
            pl.BlockSpec((1, THp, Wp, C), lambda i: (i, 0, 0, 0)),
            pl.BlockSpec((C, Cr), lambda i: (0, 0)),
            pl.BlockSpec((1, Cr), lambda i: (0, 0)),
            pl.BlockSpec((1, Cr), lambda i: (0, 0)),
            pl.BlockSpec((Cr, KK * C), lambda i: (0, 0)),
            pl.BlockSpec((1, KK * C), lambda i: (0, 0)),
            pl.BlockSpec((1, C), lambda i: (0, 0)),
            pl.BlockSpec((1, C), lambda i: (0, 0)),
        ],
        out_specs=pl.BlockSpec((1, TH * W, C), lambda i: (i, 0, 0)),
        compiler_params=pltpu.CompilerParams(
            dimension_semantics=("parallel",),
            vmem_limit_bytes=48 * 1024 * 1024,
        ),
    )(xt,
      params["w1"].astype(jnp.float32),
      s1[None, :].astype(jnp.float32),
      bn1b[None, :].astype(jnp.float32),
      w2e.astype(jnp.float32),
      b2e[None, :].astype(jnp.float32),
      s3[None, :].astype(jnp.float32),
      sh3[None, :].astype(jnp.float32))

    out = out.reshape(B, H, W, C)                     # (B*R, TH*W, C) -> (B, H, W, C)
    return jnp.transpose(out, (0, 3, 1, 2))           # back to NCHW


# ------------------------- pure-JAX reference ---------------------------------


def inv2d_relu_reference(x_nchw, params, kernel_size=3):
    eps = 1e-5
    B, C, H, W = x_nchw.shape
    K = kernel_size
    KK = K * K
    pad = (K - 1) // 2
    GC = GROUP_CHANNELS
    x = jnp.transpose(x_nchw, (0, 2, 3, 1)).astype(jnp.float32)           # NHWC

    h = jnp.einsum("bhwc,cd->bhwd", x, params["w1"]) + params["b1"]
    h = ((h - params["bn1_mean"]) / jnp.sqrt(params["bn1_var"] + eps)
         * params["bn1_gamma"] + params["bn1_beta"])
    h = jnp.maximum(h, 0.0)
    wgt = jnp.einsum("bhwd,de->bhwe", h, params["w2"]) + params["b2"]     # (B,H,W,G*KK)

    xp = jnp.pad(x, ((0, 0), (pad, pad), (pad, pad), (0, 0)))
    out = jnp.zeros_like(x)
    for ky in range(K):
        for kx in range(K):
            k = ky * K + kx
            xs = xp[:, ky:ky + H, kx:kx + W, :]
            wk = jnp.repeat(wgt[..., k::KK], GC, axis=-1)                 # (B,H,W,C)
            out = out + wk * xs
    out = ((out - params["bn_mean"]) / jnp.sqrt(params["bn_var"] + eps)
           * params["bn_gamma"] + params["bn_beta"])
    out = jnp.maximum(out, 0.0)
    return jnp.transpose(out, (0, 3, 1, 2))


# ------------------------------ params / main ---------------------------------


def make_params(key, C, K):
    GC = GROUP_CHANNELS
    G = C // GC
    Cr = C // REDUCTION
    ks = jax.random.split(key, 12)
    # kaiming_normal_: std = sqrt(2 / fan_in); fan_in = in_channels for a 1x1 conv
    w1 = jax.random.normal(ks[0], (C, Cr), jnp.float32) * jnp.sqrt(2.0 / C)
    b1 = jax.random.uniform(ks[1], (Cr,), jnp.float32,
                            minval=-1.0 / np.sqrt(C), maxval=1.0 / np.sqrt(C))
    w2 = jax.random.normal(ks[2], (Cr, G * K * K), jnp.float32) * jnp.sqrt(2.0 / Cr)
    b2 = jax.random.uniform(ks[3], (G * K * K,), jnp.float32,
                            minval=-1.0 / np.sqrt(Cr), maxval=1.0 / np.sqrt(Cr))
    # Non-trivial (inference-mode) BatchNorm statistics so the fold path is exercised.
    # (The PyTorch init sets gamma=1 / beta=0, but forward semantics are identical.)
    return dict(
        w1=w1, b1=b1, w2=w2, b2=b2,
        bn1_gamma=jax.random.uniform(ks[4], (Cr,), jnp.float32, minval=0.5, maxval=1.5),
        bn1_beta=0.1 * jax.random.normal(ks[5], (Cr,), jnp.float32),
        bn1_mean=0.1 * jax.random.normal(ks[6], (Cr,), jnp.float32),
        bn1_var=jax.random.uniform(ks[7], (Cr,), jnp.float32, minval=0.5, maxval=1.5),
        bn_gamma=jax.random.uniform(ks[8], (C,), jnp.float32, minval=0.5, maxval=1.5),
        bn_beta=0.1 * jax.random.normal(ks[9], (C,), jnp.float32),
        bn_mean=0.1 * jax.random.normal(ks[10], (C,), jnp.float32),
        bn_var=jax.random.uniform(ks[11], (C,), jnp.float32, minval=0.5, maxval=1.5),
    )


if __name__ == "__main__":
    K, stride = 3, 1
    key = jax.random.PRNGKey(0)

    # (B, C, H, W, row_tile): lane-dense C=128 primary config + small C=16 (G=1) config
    configs = [(2, 128, 16, 16, 8), (2, 16, 16, 16, 8)]
    for (B, C, H, W, rt) in configs:
        key, kx, kp = jax.random.split(key, 3)
        x = jax.random.normal(kx, (B, C, H, W), jnp.float32)
        # round to bf16-representable values so the kernel's bf16 input staging is lossless
        x = x.astype(jnp.bfloat16).astype(jnp.float32)
        params = make_params(kp, C, K)

        fn = jax.jit(functools.partial(inv2d_relu, kernel_size=K, stride=stride,
                                       row_tile=rt))
        out = jax.block_until_ready(fn(x, params))

        ref = inv2d_relu_reference(x, params, kernel_size=K)
        np.testing.assert_allclose(np.asarray(out), np.asarray(ref),
                                   rtol=2e-3, atol=2e-3)

    print("KERNEL_OK")
</pallas_src>

<mosaic_0001>
module attributes {stable_mosaic.version = 11 : i64} {
  func.func @_inv2d_relu_kernel(%arg0: i32, %arg1: memref<1x10x18x128xbf16, #tpu.memory_space<vmem>>, %arg2: memref<128x32xf32, #tpu.memory_space<vmem>>, %arg3: memref<1x32xf32, #tpu.memory_space<vmem>>, %arg4: memref<1x32xf32, #tpu.memory_space<vmem>>, %arg5: memref<32x1152xf32, #tpu.memory_space<vmem>>, %arg6: memref<1x1152xf32, #tpu.memory_space<vmem>>, %arg7: memref<1x128xf32, #tpu.memory_space<vmem>>, %arg8: memref<1x128xf32, #tpu.memory_space<vmem>>, %arg9: memref<1x128x128xf32, #tpu.memory_space<vmem>>) attributes {dimension_semantics = [#tpu.dimension_semantics<parallel>], iteration_bounds = array<i64: 4>, scalar_prefetch = 0 : i64, scratch_operands = 0 : i64, tpu.core_type = #tpu.core_type<tc>, window_params = [{transform_indices = @transform_0, window_bounds = array<i64: 1, 10, 18, 128>}, {pipeline_mode = #tpu.pipeline_mode<synchronous>, transform_indices = @transform_1, window_bounds = array<i64: 128, 32>}, {pipeline_mode = #tpu.pipeline_mode<synchronous>, transform_indices = @transform_2, window_bounds = array<i64: 1, 32>}, {pipeline_mode = #tpu.pipeline_mode<synchronous>, transform_indices = @transform_3, window_bounds = array<i64: 1, 32>}, {pipeline_mode = #tpu.pipeline_mode<synchronous>, transform_indices = @transform_4, window_bounds = array<i64: 32, 1152>}, {pipeline_mode = #tpu.pipeline_mode<synchronous>, transform_indices = @transform_5, window_bounds = array<i64: 1, 1152>}, {pipeline_mode = #tpu.pipeline_mode<synchronous>, transform_indices = @transform_6, window_bounds = array<i64: 1, 128>}, {pipeline_mode = #tpu.pipeline_mode<synchronous>, transform_indices = @transform_7, window_bounds = array<i64: 1, 128>}, {transform_indices = @transform_8, window_bounds = array<i64: 1, 128, 128>}]} {
    %c0 = arith.constant 0 : index
    %c1 = arith.constant 1 : index
    %c1_0 = arith.constant 1 : index
    %c0_1 = arith.constant 0 : index
    %0 = vector.load %arg1[%c0, %c1, %c1_0, %c0_1] : memref<1x10x18x128xbf16, #tpu.memory_space<vmem>>, vector<1x8x16x128xbf16>
    %1 = vector.shape_cast %0 : vector<1x8x16x128xbf16> to vector<8x16x128xbf16>
    %2 = vector.shape_cast %1 : vector<8x16x128xbf16> to vector<128x128xbf16>
    %3 = arith.extf %2 : vector<128x128xbf16> to vector<128x128xf32>
    %c0_2 = arith.constant 0 : index
    %c0_3 = arith.constant 0 : index
    %4 = vector.load %arg2[%c0_2, %c0_3] : memref<128x32xf32, #tpu.memory_space<vmem>>, vector<128x32xf32>
    %cst = arith.constant dense<0.000000e+00> : vector<128x32xf32>
    %5 = tpu.matmul %3, %4, %cst {dimension_numbers = #tpu.dot_dimension_numbers<[1], [0], [0], [1], [0, 0, 1, 1], [], []>} : vector<128x128xf32>, vector<128x32xf32>, vector<128x32xf32> -> vector<128x32xf32>
    %c0_4 = arith.constant 0 : index
    %c0_5 = arith.constant 0 : index
    %6 = vector.load %arg3[%c0_4, %c0_5] : memref<1x32xf32, #tpu.memory_space<vmem>>, vector<1x32xf32>
    %7 = vector.broadcast %6 : vector<1x32xf32> to vector<128x32xf32>
    %8 = arith.mulf %5, %7 : vector<128x32xf32>
    %c0_6 = arith.constant 0 : index
    %c0_7 = arith.constant 0 : index
    %9 = vector.load %arg4[%c0_6, %c0_7] : memref<1x32xf32, #tpu.memory_space<vmem>>, vector<1x32xf32>
    %10 = vector.broadcast %9 : vector<1x32xf32> to vector<128x32xf32>
    %11 = arith.addf %8, %10 : vector<128x32xf32>
    %cst_8 = arith.constant 0.000000e+00 : f32
    %12 = vector.broadcast %cst_8 : f32 to vector<128x32xf32>
    %13 = arith.maximumf %11, %12 : vector<128x32xf32>
    %c0_9 = arith.constant 0 : index
    %c0_10 = arith.constant 0 : index
    %14 = vector.load %arg5[%c0_9, %c0_10] : memref<32x1152xf32, #tpu.memory_space<vmem>>, vector<32x1152xf32>
    %cst_11 = arith.constant dense<0.000000e+00> : vector<128x1152xf32>
    %15 = tpu.matmul %13, %14, %cst_11 {dimension_numbers = #tpu.dot_dimension_numbers<[1], [0], [0], [1], [0, 0, 1, 1], [], []>} : vector<128x32xf32>, vector<32x1152xf32>, vector<128x1152xf32> -> vector<128x1152xf32>
    %c0_12 = arith.constant 0 : index
    %c0_13 = arith.constant 0 : index
    %16 = vector.load %arg6[%c0_12, %c0_13] : memref<1x1152xf32, #tpu.memory_space<vmem>>, vector<1x1152xf32>
    %17 = vector.broadcast %16 : vector<1x1152xf32> to vector<128x1152xf32>
    %18 = arith.addf %15, %17 : vector<128x1152xf32>
    %c0_14 = arith.constant 0 : index
    %c0_15 = arith.constant 0 : index
    %c0_16 = arith.constant 0 : index
    %c0_17 = arith.constant 0 : index
    %19 = vector.load %arg1[%c0_14, %c0_15, %c0_16, %c0_17] : memref<1x10x18x128xbf16, #tpu.memory_space<vmem>>, vector<1x8x16x128xbf16>
    %20 = vector.shape_cast %19 : vector<1x8x16x128xbf16> to vector<8x16x128xbf16>
    %21 = vector.shape_cast %20 : vector<8x16x128xbf16> to vector<128x128xbf16>
    %22 = arith.extf %21 : vector<128x128xbf16> to vector<128x128xf32>
    %23 = vector.extract_strided_slice %18 {offsets = [0, 0], sizes = [128, 128], strides = [1, 1]} : vector<128x1152xf32> to vector<128x128xf32>
    %24 = arith.mulf %23, %22 : vector<128x128xf32>
    %c0_18 = arith.constant 0 : index
    %c0_19 = arith.constant 0 : index
    %c1_20 = arith.constant 1 : index
    %c0_21 = arith.constant 0 : index
    %25 = vector.load %arg1[%c0_18, %c0_19, %c1_20, %c0_21] : memref<1x10x18x128xbf16, #tpu.memory_space<vmem>>, vector<1x8x16x128xbf16>
    %26 = vector.shape_cast %25 : vector<1x8x16x128xbf16> to vector<8x16x128xbf16>
    %27 = vector.shape_cast %26 : vector<8x16x128xbf16> to vector<128x128xbf16>
    %28 = arith.extf %27 : vector<128x128xbf16> to vector<128x128xf32>
    %29 = vector.extract_strided_slice %18 {offsets = [0, 128], sizes = [128, 128], strides = [1, 1]} : vector<128x1152xf32> to vector<128x128xf32>
    %30 = arith.mulf %29, %28 : vector<128x128xf32>
    %31 = arith.addf %24, %30 : vector<128x128xf32>
    %c0_22 = arith.constant 0 : index
    %c0_23 = arith.constant 0 : index
    %c2 = arith.constant 2 : index
    %c0_24 = arith.constant 0 : index
    %32 = vector.load %arg1[%c0_22, %c0_23, %c2, %c0_24] : memref<1x10x18x128xbf16, #tpu.memory_space<vmem>>, vector<1x8x16x128xbf16>
    %33 = vector.shape_cast %32 : vector<1x8x16x128xbf16> to vector<8x16x128xbf16>
    %34 = vector.shape_cast %33 : vector<8x16x128xbf16> to vector<128x128xbf16>
    %35 = arith.extf %34 : vector<128x128xbf16> to vector<128x128xf32>
    %36 = vector.extract_strided_slice %18 {offsets = [0, 256], sizes = [128, 128], strides = [1, 1]} : vector<128x1152xf32> to vector<128x128xf32>
    %37 = arith.mulf %36, %35 : vector<128x128xf32>
    %38 = arith.addf %31, %37 : vector<128x128xf32>
    %c0_25 = arith.constant 0 : index
    %c1_26 = arith.constant 1 : index
    %c0_27 = arith.constant 0 : index
    %c0_28 = arith.constant 0 : index
    %39 = vector.load %arg1[%c0_25, %c1_26, %c0_27, %c0_28] : memref<1x10x18x128xbf16, #tpu.memory_space<vmem>>, vector<1x8x16x128xbf16>
    %40 = vector.shape_cast %39 : vector<1x8x16x128xbf16> to vector<8x16x128xbf16>
    %41 = vector.shape_cast %40 : vector<8x16x128xbf16> to vector<128x128xbf16>
    %42 = arith.extf %41 : vector<128x128xbf16> to vector<128x128xf32>
    %43 = vector.extract_strided_slice %18 {offsets = [0, 384], sizes = [128, 128], strides = [1, 1]} : vector<128x1152xf32> to vector<128x128xf32>
    %44 = arith.mulf %43, %42 : vector<128x128xf32>
    %45 = arith.addf %38, %44 : vector<128x128xf32>
    %46 = vector.extract_strided_slice %18 {offsets = [0, 512], sizes = [128, 128], strides = [1, 1]} : vector<128x1152xf32> to vector<128x128xf32>
    %47 = arith.mulf %46, %3 : vector<128x128xf32>
    %48 = arith.addf %45, %47 : vector<128x128xf32>
    %c0_29 = arith.constant 0 : index
    %c1_30 = arith.constant 1 : index
    %c2_31 = arith.constant 2 : index
    %c0_32 = arith.constant 0 : index
    %49 = vector.load %arg1[%c0_29, %c1_30, %c2_31, %c0_32] : memref<1x10x18x128xbf16, #tpu.memory_space<vmem>>, vector<1x8x16x128xbf16>
    %50 = vector.shape_cast %49 : vector<1x8x16x128xbf16> to vector<8x16x128xbf16>
    %51 = vector.shape_cast %50 : vector<8x16x128xbf16> to vector<128x128xbf16>
    %52 = arith.extf %51 : vector<128x128xbf16> to vector<128x128xf32>
    %53 = vector.extract_strided_slice %18 {offsets = [0, 640], sizes = [128, 128], strides = [1, 1]} : vector<128x1152xf32> to vector<128x128xf32>
    %54 = arith.mulf %53, %52 : vector<128x128xf32>
    %55 = arith.addf %48, %54 : vector<128x128xf32>
    %c0_33 = arith.constant 0 : index
    %c2_34 = arith.constant 2 : index
    %c0_35 = arith.constant 0 : index
    %c0_36 = arith.constant 0 : index
    %56 = vector.load %arg1[%c0_33, %c2_34, %c0_35, %c0_36] : memref<1x10x18x128xbf16, #tpu.memory_space<vmem>>, vector<1x8x16x128xbf16>
    %57 = vector.shape_cast %56 : vector<1x8x16x128xbf16> to vector<8x16x128xbf16>
    %58 = vector.shape_cast %57 : vector<8x16x128xbf16> to vector<128x128xbf16>
    %59 = arith.extf %58 : vector<128x128xbf16> to vector<128x128xf32>
    %60 = vector.extract_strided_slice %18 {offsets = [0, 768], sizes = [128, 128], strides = [1, 1]} : vector<128x1152xf32> to vector<128x128xf32>
    %61 = arith.mulf %60, %59 : vector<128x128xf32>
    %62 = arith.addf %55, %61 : vector<128x128xf32>
    %c0_37 = arith.constant 0 : index
    %c2_38 = arith.constant 2 : index
    %c1_39 = arith.constant 1 : index
    %c0_40 = arith.constant 0 : index
    %63 = vector.load %arg1[%c0_37, %c2_38, %c1_39, %c0_40] : memref<1x10x18x128xbf16, #tpu.memory_space<vmem>>, vector<1x8x16x128xbf16>
    %64 = vector.shape_cast %63 : vector<1x8x16x128xbf16> to vector<8x16x128xbf16>
    %65 = vector.shape_cast %64 : vector<8x16x128xbf16> to vector<128x128xbf16>
    %66 = arith.extf %65 : vector<128x128xbf16> to vector<128x128xf32>
    %67 = vector.extract_strided_slice %18 {offsets = [0, 896], sizes = [128, 128], strides = [1, 1]} : vector<128x1152xf32> to vector<128x128xf32>
    %68 = arith.mulf %67, %66 : vector<128x128xf32>
    %69 = arith.addf %62, %68 : vector<128x128xf32>
    %c0_41 = arith.constant 0 : index
    %c2_42 = arith.constant 2 : index
    %c2_43 = arith.constant 2 : index
    %c0_44 = arith.constant 0 : index
    %70 = vector.load %arg1[%c0_41, %c2_42, %c2_43, %c0_44] : memref<1x10x18x128xbf16, #tpu.memory_space<vmem>>, vector<1x8x16x128xbf16>
    %71 = vector.shape_cast %70 : vector<1x8x16x128xbf16> to vector<8x16x128xbf16>
    %72 = vector.shape_cast %71 : vector<8x16x128xbf16> to vector<128x128xbf16>
    %73 = arith.extf %72 : vector<128x128xbf16> to vector<128x128xf32>
    %74 = vector.extract_strided_slice %18 {offsets = [0, 1024], sizes = [128, 128], strides = [1, 1]} : vector<128x1152xf32> to vector<128x128xf32>
    %75 = arith.mulf %74, %73 : vector<128x128xf32>
    %76 = arith.addf %69, %75 : vector<128x128xf32>
    %c0_45 = arith.constant 0 : index
    %c0_46 = arith.constant 0 : index
    %77 = vector.load %arg7[%c0_45, %c0_46] : memref<1x128xf32, #tpu.memory_space<vmem>>, vector<1x128xf32>
    %78 = vector.broadcast %77 : vector<1x128xf32> to vector<128x128xf32>
    %79 = arith.mulf %76, %78 : vector<128x128xf32>
    %c0_47 = arith.constant 0 : index
    %c0_48 = arith.constant 0 : index
    %80 = vector.load %arg8[%c0_47, %c0_48] : memref<1x128xf32, #tpu.memory_space<vmem>>, vector<1x128xf32>
    %81 = vector.broadcast %80 : vector<1x128xf32> to vector<128x128xf32>
    %82 = arith.addf %79, %81 : vector<128x128xf32>
    %cst_49 = arith.constant 0.000000e+00 : f32
    %83 = vector.broadcast %cst_49 : f32 to vector<128x128xf32>
    %84 = arith.maximumf %82, %83 : vector<128x128xf32>
    %c0_50 = arith.constant 0 : index
    %c0_51 = arith.constant 0 : index
    %c0_52 = arith.constant 0 : index
    %85 = vector.load %arg9[%c0_50, %c0_51, %c0_52] : memref<1x128x128xf32, #tpu.memory_space<vmem>>, vector<1x128x128xf32>
    %86 = vector.shape_cast %85 : vector<1x128x128xf32> to vector<128x128xf32>
    %87 = vector.shape_cast %84 : vector<128x128xf32> to vector<1x128x128xf32>
    tpu.vector_store %arg9[%c0_50, %c0_51, %c0_52], %87 {strides = array<i32>} : memref<1x128x128xf32, #tpu.memory_space<vmem>>, vector<1x128x128xf32>,
    return
  }
  func.func @transform_0(%arg0: i32) -> (i32, i32, i32, i32) {
    %c0_i32 = arith.constant 0 : i32
    %c0_i32_0 = arith.constant 0 : i32
    %c0_i32_1 = arith.constant 0 : i32
    %c0_i32_2 = arith.constant 0 : i32
    return %arg0, %c0_i32, %c0_i32_0, %c0_i32_1 : i32, i32, i32, i32
  }
  func.func @transform_1(%arg0: i32) -> (i32, i32) {
    %c0_i32 = arith.constant 0 : i32
    %c0_i32_0 = arith.constant 0 : i32
    %c0_i32_1 = arith.constant 0 : i32
    return %c0_i32, %c0_i32_0 : i32, i32
  }
  func.func @transform_2(%arg0: i32) -> (i32, i32) {
    %c0_i32 = arith.constant 0 : i32
    %c0_i32_0 = arith.constant 0 : i32
    %c0_i32_1 = arith.constant 0 : i32
    return %c0_i32, %c0_i32_0 : i32, i32
  }
  func.func @transform_3(%arg0: i32) -> (i32, i32) {
    %c0_i32 = arith.constant 0 : i32
    %c0_i32_0 = arith.constant 0 : i32
    %c0_i32_1 = arith.constant 0 : i32
    return %c0_i32, %c0_i32_0 : i32, i32
  }
  func.func @transform_4(%arg0: i32) -> (i32, i32) {
    %c0_i32 = arith.constant 0 : i32
    %c0_i32_0 = arith.constant 0 : i32
    %c0_i32_1 = arith.constant 0 : i32
    return %c0_i32, %c0_i32_0 : i32, i32
  }
  func.func @transform_5(%arg0: i32) -> (i32, i32) {
    %c0_i32 = arith.constant 0 : i32
    %c0_i32_0 = arith.constant 0 : i32
    %c0_i32_1 = arith.constant 0 : i32
    return %c0_i32, %c0_i32_0 : i32, i32
  }
  func.func @transform_6(%arg0: i32) -> (i32, i32) {
    %c0_i32 = arith.constant 0 : i32
    %c0_i32_0 = arith.constant 0 : i32
    %c0_i32_1 = arith.constant 0 : i32
    return %c0_i32, %c0_i32_0 : i32, i32
  }
  func.func @transform_7(%arg0: i32) -> (i32, i32) {
    %c0_i32 = arith.constant 0 : i32
    %c0_i32_0 = arith.constant 0 : i32
    %c0_i32_1 = arith.constant 0 : i32
    return %c0_i32, %c0_i32_0 : i32, i32
  }
  func.func @transform_8(%arg0: i32) -> (i32, i32, i32) {
    %c0_i32 = arith.constant 0 : i32
    %c0_i32_0 = arith.constant 0 : i32
    %c0_i32_1 = arith.constant 0 : i32
    return %arg0, %c0_i32, %c0_i32_0 : i32, i32, i32
  }
}

</mosaic_0001>

<llo_original>
// kernel: inv2d_relu.1
$region0: #{inv2d_relu.1}
  #allocation0 [shape = 'u32[]', space=smem, size = 0x4, offset = 0x4, fixed_abs, tag = 'smem constant byte address 0x4 - core index']
  #allocation1 [shape = 'u32[144,128]{1,0:T(1,128)}', space=vmem, size = 0x12000, scoped, tag = 'internal scratch']
  %s0 = inlined_call_operand.vmem [shape: bf16[4,10,18,128], index: 0, kind: input, shape index: {}]
  %s1 = inlined_call_operand.vmem [shape: f32[128,32], index: 1, kind: input, shape index: {}]
  %s2 = inlined_call_operand.vmem [shape: f32[1,32], index: 2, kind: input, shape index: {}]
  %s3 = inlined_call_operand.vmem [shape: f32[1,32], index: 3, kind: input, shape index: {}]
  %s4 = inlined_call_operand.vmem [shape: f32[32,1152], index: 4, kind: input, shape index: {}]
  %s5 = inlined_call_operand.vmem [shape: f32[1,1152], index: 5, kind: input, shape index: {}]
  %s6 = inlined_call_operand.vmem [shape: f32[1,128], index: 6, kind: input, shape index: {}]
  %s7 = inlined_call_operand.vmem [shape: f32[1,128], index: 7, kind: input, shape index: {}]
  %s8 = inlined_call_operand.hbm [shape: f32[4,128,128], index: 8, kind: output, shape index: {}]
  %s9 = sld [smem:[#allocation0]]
  $region65: #{inv2d_relu.1} parent=0
    _
  %s11 = ssub.s32 1, %s9
  %s12 = scalar_select 0, %s11, %s9
  $region1: #{inv2d_relu.1} parent=0
    #allocation2 [shape = 'u8[131072]{0}', space=vmem, size = 0x20000, scoped, tag = 'output window, operand 0']
    #allocation3 [shape = 's32[2]{0}', space=sflag, size = 0x8, scoped, tag = 'scoped memory for inv2d_relu.1']
    %13 = vsyncpa [#allocation3], 0
    %s14 = scalar_lea.sflag [#allocation3], 1
    %15 = vsyncpa %s14, 0
    loop: start=0, step=1, limit=6
    $region2: #{inv2d_relu.1} parent=1 // loop_pre_header
      _
    $region3: #{inv2d_relu.1} parent=1 // loop_header
      %s17 = sphi 0, %s21
      %p18 = scmp.ge.s32.totalorder %s17, 6
      %s27 = sphi 0, %s29
      %s30 = sphi 0, %s27
      %s31 = sphi 0, %s30
      %s47 = sphi 0, %s31
      %s51 = sphi 0, %s51
      %s53 = sphi 0, %s51
      %s54 = sphi 0, %s53
      %s68 = sphi 0, %s54
      %s72 = sphi 0, %s72
      %s74 = sphi 0, %s72
      %s75 = sphi 0, %s74
      %s89 = sphi 0, %s75
      %s93 = sphi 0, %s93
      %s95 = sphi 0, %s93
      %s96 = sphi 0, %s95
      %s110 = sphi 0, %s96
      %s114 = sphi 0, %s114
      %s116 = sphi 0, %s114
      %s117 = sphi 0, %s116
      %s131 = sphi 0, %s117
      %s135 = sphi 0, %s135
      %s137 = sphi 0, %s135
      %s138 = sphi 0, %s137
      %s152 = sphi 0, %s138
      %s156 = sphi 0, %s156
      %s158 = sphi 0, %s156
      %s159 = sphi 0, %s158
      %s173 = sphi 0, %s159
      %s177 = sphi 0, %s177
      %s179 = sphi 0, %s177
      %s180 = sphi 0, %s179
      %s194 = sphi 0, %s180
      %s200 = sphi 0, %s202
      %s203 = sphi 0, %s200
      %s204 = sphi 0, %s203
      %s220 = sphi 0, %s204
    $region4: #{inv2d_relu.1} parent=1 // loop_header_branch
      %20 = sbr.rel (%p18) target = $region8
    $region5: #{inv2d_relu.1} parent=1 // loop_body
      %s22 = ssub.s32 %s17, 1
      %s23 = ssub.s32 %s17, 2
      %s24 = sadd.s32 %s17, 1
      %s25 = ssub.s32 %s17, %s24
      %p26 = scmp.eq.s32.totalorder %s25, 0
      %s28 = sadd.s32 %s27, 1
      %s29 = scalar_select %p26, %s27, %s28
      %p32 = pneg %p26
      %p33 = scmp.eq.s32.totalorder %s17, 3
      %p34 = por %p32, %p33
      %p35 = scmp.ne.s32.totalorder %s27, %s30
      %p36 = scmp.eq.s32.totalorder %s17, 0
      %p37 = por %p35, %p36
      %p38 = scmp.ne.s32.totalorder %s27, %s30
      %p39 = scmp.eq.s32.totalorder %s22, 3
      %p40 = por %p38, %p39
      %p41 = scmp.ne.s32.totalorder %s30, %s31
      %p42 = scmp.eq.s32.totalorder %s22, 0
      %p43 = por %p41, %p42
      %p44 = scmp.ne.s32.totalorder %s30, %s31
      %p45 = scmp.eq.s32.totalorder %s23, 3
      %p46 = por %p44, %p45
      %p48 = scmp.ne.s32.totalorder %s31, %s47
      %p49 = scmp.eq.s32.totalorder %s23, 0
      %p50 = por %p48, %p49
      %s52 = sadd.s32 %s51, 1
      %p55 = scmp.eq.s32.totalorder %s17, 3
      %p56 = scmp.ne.s32.totalorder %s51, %s53
      %p57 = scmp.eq.s32.totalorder %s17, 0
      %p58 = por %p56, %p57
      %p59 = scmp.ne.s32.totalorder %s51, %s53
      %p60 = scmp.eq.s32.totalorder %s22, 3
      %p61 = por %p59, %p60
      %p62 = scmp.ne.s32.totalorder %s53, %s54
      %p63 = scmp.eq.s32.totalorder %s22, 0
      %p64 = por %p62, %p63
      %p65 = scmp.ne.s32.totalorder %s53, %s54
      %p66 = scmp.eq.s32.totalorder %s23, 3
      %p67 = por %p65, %p66
      %p69 = scmp.ne.s32.totalorder %s54, %s68
      %p70 = scmp.eq.s32.totalorder %s23, 0
      %p71 = por %p69, %p70
      %s73 = sadd.s32 %s72, 1
      %p76 = scmp.eq.s32.totalorder %s17, 3
      %p77 = scmp.ne.s32.totalorder %s72, %s74
      %p78 = scmp.eq.s32.totalorder %s17, 0
      %p79 = por %p77, %p78
      %p80 = scmp.ne.s32.totalorder %s72, %s74
      %p81 = scmp.eq.s32.totalorder %s22, 3
      %p82 = por %p80, %p81
      %p83 = scmp.ne.s32.totalorder %s74, %s75
      %p84 = scmp.eq.s32.totalorder %s22, 0
      %p85 = por %p83, %p84
      %p86 = scmp.ne.s32.totalorder %s74, %s75
      %p87 = scmp.eq.s32.totalorder %s23, 3
      %p88 = por %p86, %p87
      %p90 = scmp.ne.s32.totalorder %s75, %s89
      %p91 = scmp.eq.s32.totalorder %s23, 0
      %p92 = por %p90, %p91
      %s94 = sadd.s32 %s93, 1
      %p97 = scmp.eq.s32.totalorder %s17, 3
      %p98 = scmp.ne.s32.totalorder %s93, %s95
      %p99 = scmp.eq.s32.totalorder %s17, 0
      %p100 = por %p98, %p99
      %p101 = scmp.ne.s32.totalorder %s93, %s95
      %p102 = scmp.eq.s32.totalorder %s22, 3
      %p103 = por %p101, %p102
      %p104 = scmp.ne.s32.totalorder %s95, %s96
      %p105 = scmp.eq.s32.totalorder %s22, 0
      %p106 = por %p104, %p105
      %p107 = scmp.ne.s32.totalorder %s95, %s96
      %p108 = scmp.eq.s32.totalorder %s23, 3
      %p109 = por %p107, %p108
      %p111 = scmp.ne.s32.totalorder %s96, %s110
      %p112 = scmp.eq.s32.totalorder %s23, 0
      %p113 = por %p111, %p112
      %s115 = sadd.s32 %s114, 1
      %p118 = scmp.eq.s32.totalorder %s17, 3
      %p119 = scmp.ne.s32.totalorder %s114, %s116
      %p120 = scmp.eq.s32.totalorder %s17, 0
      %p121 = por %p119, %p120
      %p122 = scmp.ne.s32.totalorder %s114, %s116
      %p123 = scmp.eq.s32.totalorder %s22, 3
      %p124 = por %p122, %p123
      %p125 = scmp.ne.s32.totalorder %s116, %s117
      %p126 = scmp.eq.s32.totalorder %s22, 0
      %p127 = por %p125, %p126
      %p128 = scmp.ne.s32.totalorder %s116, %s117
      %p129 = scmp.eq.s32.totalorder %s23, 3
      %p130 = por %p128, %p129
      %p132 = scmp.ne.s32.totalorder %s117, %s131
      %p133 = scmp.eq.s32.totalorder %s23, 0
      %p134 = por %p132, %p133
      %s136 = sadd.s32 %s135, 1
      %p139 = scmp.eq.s32.totalorder %s17, 3
      %p140 = scmp.ne.s32.totalorder %s135, %s137
      %p141 = scmp.eq.s32.totalorder %s17, 0
      %p142 = por %p140, %p141
      %p143 = scmp.ne.s32.totalorder %s135, %s137
      %p144 = scmp.eq.s32.totalorder %s22, 3
      %p145 = por %p143, %p144
      %p146 = scmp.ne.s32.totalorder %s137, %s138
      %p147 = scmp.eq.s32.totalorder %s22, 0
      %p148 = por %p146, %p147
      %p149 = scmp.ne.s32.totalorder %s137, %s138
      %p150 = scmp.eq.s32.totalorder %s23, 3
      %p151 = por %p149, %p150
      %p153 = scmp.ne.s32.totalorder %s138, %s152
      %p154 = scmp.eq.s32.totalorder %s23, 0
      %p155 = por %p153, %p154
      %s157 = sadd.s32 %s156, 1
      %p160 = scmp.eq.s32.totalorder %s17, 3
      %p161 = scmp.ne.s32.totalorder %s156, %s158
      %p162 = scmp.eq.s32.totalorder %s17, 0
      %p163 = por %p161, %p162
      %p164 = scmp.ne.s32.totalorder %s156, %s158
      %p165 = scmp.eq.s32.totalorder %s22, 3
      %p166 = por %p164, %p165
      %p167 = scmp.ne.s32.totalorder %s158, %s159
      %p168 = scmp.eq.s32.totalorder %s22, 0
      %p169 = por %p167, %p168
      %p170 = scmp.ne.s32.totalorder %s158, %s159
      %p171 = scmp.eq.s32.totalorder %s23, 3
      %p172 = por %p170, %p171
      %p174 = scmp.ne.s32.totalorder %s159, %s173
      %p175 = scmp.eq.s32.totalorder %s23, 0
      %p176 = por %p174, %p175
      %s178 = sadd.s32 %s177, 1
      %p181 = scmp.eq.s32.totalorder %s17, 3
      %p182 = scmp.ne.s32.totalorder %s177, %s179
      %p183 = scmp.eq.s32.totalorder %s17, 0
      %p184 = por %p182, %p183
      %p185 = scmp.ne.s32.totalorder %s177, %s179
      %p186 = scmp.eq.s32.totalorder %s22, 3
      %p187 = por %p185, %p186
      %p188 = scmp.ne.s32.totalorder %s179, %s180
      %p189 = scmp.eq.s32.totalorder %s22, 0
      %p190 = por %p188, %p189
      %p191 = scmp.ne.s32.totalorder %s179, %s180
      %p192 = scmp.eq.s32.totalorder %s23, 3
      %p193 = por %p191, %p192
      %p195 = scmp.ne.s32.totalorder %s180, %s194
      %p196 = scmp.eq.s32.totalorder %s23, 0
      %p197 = por %p195, %p196
      %s198 = ssub.s32 %s17, %s24
      %p199 = scmp.eq.s32.totalorder %s198, 0
      %s201 = sadd.s32 %s200, 1
      %s202 = scalar_select %p199, %s200, %s201
      %p205 = pneg %p199
      %p206 = scmp.eq.s32.totalorder %s17, 3
      %p207 = por %p205, %p206
      %p208 = scmp.ne.s32.totalorder %s200, %s203
      %p209 = scmp.eq.s32.totalorder %s17, 0
      %p210 = por %p208, %p209
      %p211 = scmp.ne.s32.totalorder %s200, %s203
      %p212 = scmp.eq.s32.totalorder %s22, 3
      %p213 = por %p211, %p212
      %p214 = scmp.ne.s32.totalorder %s203, %s204
      %p215 = scmp.eq.s32.totalorder %s22, 0
      %p216 = por %p214, %p215
      %p217 = scmp.ne.s32.totalorder %s203, %s204
      %p218 = scmp.eq.s32.totalorder %s23, 3
      %p219 = por %p217, %p218
      %p221 = scmp.ne.s32.totalorder %s204, %s220
      %p222 = scmp.eq.s32.totalorder %s23, 0
      %p223 = por %p221, %p222
      %p224 = scmp.le.s32.totalorder 1, %s17
      %p225 = scmp.lt.s32.totalorder %s17, 5
      %p226 = pnand %p224, %p225
      %p227 = pneg %p226
      // Predicated region
      $region9: #{inv2d_relu.1} parent=5 // pred_check
        _
      $region10: #{inv2d_relu.1} parent=5 // pred_check_branch
        %229 = sbr.rel (%p226) target = $region12
      $region11: #{inv2d_relu.1} parent=5 // pred_region
        %s230 = ssub.s32 %s17, 1
        // Predicated region
        $region13: #{inv2d_relu.1} parent=11 // pred_check
          %p231 = pneg %p64
        $region14: #{inv2d_relu.1} parent=11 // pred_check_branch
          %233 = sbr.rel (%p231) target = $region16
        $region15: #{inv2d_relu.1} parent=11 // pred_region
          _
        $region16: #{inv2d_relu.1} parent=11 // pred_fallthru
          _
        // Predicated region
        $region17: #{inv2d_relu.1} parent=11 // pred_check
          %p234 = pneg %p85
        $region18: #{inv2d_relu.1} parent=11 // pred_check_branch
          %236 = sbr.rel (%p234) target = $region20
        $region19: #{inv2d_relu.1} parent=11 // pred_region
          _
        $region20: #{inv2d_relu.1} parent=11 // pred_fallthru
          _
        // Predicated region
        $region21: #{inv2d_relu.1} parent=11 // pred_check
          %p237 = pneg %p106
        $region22: #{inv2d_relu.1} parent=11 // pred_check_branch
          %239 = sbr.rel (%p237) target = $region24
        $region23: #{inv2d_relu.1} parent=11 // pred_region
          _
        $region24: #{inv2d_relu.1} parent=11 // pred_fallthru
          _
        // Predicated region
        $region25: #{inv2d_relu.1} parent=11 // pred_check
          %p240 = pneg %p127
        $region26: #{inv2d_relu.1} parent=11 // pred_check_branch
          %242 = sbr.rel (%p240) target = $region28
        $region27: #{inv2d_relu.1} parent=11 // pred_region
          _
        $region28: #{inv2d_relu.1} parent=11 // pred_fallthru
          _
        // Predicated region
        $region29: #{inv2d_relu.1} parent=11 // pred_check
          %p243 = pneg %p148
        $region30: #{inv2d_relu.1} parent=11 // pred_check_branch
          %245 = sbr.rel (%p243) target = $region32
        $region31: #{inv2d_relu.1} parent=11 // pred_region
          _
        $region32: #{inv2d_relu.1} parent=11 // pred_fallthru
          _
        // Predicated region
        $region33: #{inv2d_relu.1} parent=11 // pred_check
          %p246 = pneg %p169
        $region34: #{inv2d_relu.1} parent=11 // pred_check_branch
          %248 = sbr.rel (%p246) target = $region36
        $region35: #{inv2d_relu.1} parent=11 // pred_region
          _
        $region36: #{inv2d_relu.1} parent=11 // pred_fallthru
          _
        // Predicated region
        $region37: #{inv2d_relu.1} parent=11 // pred_check
          %p249 = pneg %p190
        $region38: #{inv2d_relu.1} parent=11 // pred_check_branch
          %251 = sbr.rel (%p249) target = $region40
        $region39: #{inv2d_relu.1} parent=11 // pred_region
          _
        $region40: #{inv2d_relu.1} parent=11 // pred_fallthru
          _
      $region12: #{inv2d_relu.1} parent=5 // pred_fallthru
        _
      %p252 = scmp.lt.s32.totalorder %s17, 4
      // Predicated region
      $region41: #{inv2d_relu.1} parent=5 // pred_check
        %p253 = pneg %p252
      $region42: #{inv2d_relu.1} parent=5 // pred_check_branch
        %255 = sbr.rel (%p253) target = $region44
      $region43: #{inv2d_relu.1} parent=5 // pred_region
        // Predicated region
        $region45: #{inv2d_relu.1} parent=43 // pred_check
          %p256 = pneg %p37
        $region46: #{inv2d_relu.1} parent=43 // pred_check_branch
          %258 = sbr.rel (%p256) target = $region48
        $region47: #{inv2d_relu.1} parent=43 // pred_region
          %p259 = scmp.lt.s32.totalorder %s17, 3
          %s260 = scalar_select %p259, %s17, 3
          %s261 = smul.addr %s260, 30
          %s262 = smul.addr %s261, 4
          %s263 = scalar_lea.vmem %s0, %s262
        $region48: #{inv2d_relu.1} parent=43 // pred_fallthru
          _
      $region44: #{inv2d_relu.1} parent=5 // pred_fallthru
        _
      %p264 = scmp.le.s32.totalorder 1, %s17
      %p265 = scmp.lt.s32.totalorder %s17, 5
      %p266 = pnand %p264, %p265
      %p267 = pneg %p266
      // Predicated region
      $region49: #{inv2d_relu.1} parent=5 // pred_check
        _
      $region50: #{inv2d_relu.1} parent=5 // pred_check_branch
        %269 = sbr.rel (%p266) target = $region52
      $region51: #{inv2d_relu.1} parent=5 // pred_region
        %s270 = ssub.s32 %s17, 1
        %p271 = scmp.lt.s32.totalorder %s22, 3
        %s272 = scalar_select %p271, %s22, 3
        %s273 = smul.addr %s272, 30
        %s274 = smul.addr %s273, 4
        %s275 = scalar_lea.vmem %s0, %s274
        %p276 = pneg %p43
        %p277 = pneg %p40
        %p278 = pneg %p64
        %p279 = pneg %p61
        %p280 = pneg %p85
        %p281 = pneg %p82
        %p282 = pneg %p106
        %p283 = pneg %p103
        %p284 = pneg %p127
        %p285 = pneg %p124
        %p286 = pneg %p148
        %p287 = pneg %p145
        %p288 = pneg %p169
        %p289 = pneg %p166
        %p290 = pneg %p190
        %p291 = pneg %p187
        %p292 = pneg %p216
        %p293 = pneg %p213
        %s294 = sand.u32 %s203, 1
        %s295 = scalar_lea.sflag [#allocation3], %s294
        %s296 = sand.u32 %s203, 1
        %s297 = smul.addr %s296, 128
        %s298 = scalar_lea.vmem [#allocation2], %s297
        %p299 = scmp.lt.s32.totalorder %s22, 3
        %s300 = scalar_select %p299, %s22, 3
        %s301 = smul.addr %s300, 30
        %s302 = smul.addr %s301, 4
        %s303 = scalar_lea.vmem %s0, %s302
        %s304 = scalar_lea.vmem %s303, 12
        %v305 = vld [vmem:[%s304] sm:$0xf]
        %v306 = vld [vmem:[%s304 + $0x4] sm:$0xf]
        %v307 = vld [vmem:[%s304 + $0x8] sm:$0x1]
        %v308 = vld [vmem:[%s304 + $0xc] sm:$0xf]
        %v309 = vld [vmem:[%s304 + $0x10] sm:$0xf]
        %v310 = vld [vmem:[%s304 + $0x14] sm:$0x1]
        %v311 = vld [vmem:[%s304 + $0x18] sm:$0xf]
        %v312 = vld [vmem:[%s304 + $0x1c] sm:$0xf]
        %v313 = vld [vmem:[%s304 + $0x20] sm:$0x1]
        %v314 = vld [vmem:[%s304 + $0x24] sm:$0xf]
        %v315 = vld [vmem:[%s304 + $0x28] sm:$0xf]
        %v316 = vld [vmem:[%s304 + $0x2c] sm:$0x1]
        %v317 = vld [vmem:[%s304 + $0x30] sm:$0xf]
        %v318 = vld [vmem:[%s304 + $0x34] sm:$0xf]
        %v319 = vld [vmem:[%s304 + $0x38] sm:$0x1]
        %v320 = vld [vmem:[%s304 + $0x3c] sm:$0xf]
        %v321 = vld [vmem:[%s304 + $0x40] sm:$0xf]
        %v322 = vld [vmem:[%s304 + $0x44] sm:$0x1]
        %v323 = vld [vmem:[%s304 + $0x48] sm:$0xf]
        %v324 = vld [vmem:[%s304 + $0x4c] sm:$0xf]
        %v325 = vld [vmem:[%s304 + $0x50] sm:$0x1]
        %v326 = vld [vmem:[%s304 + $0x54] sm:$0xf]
        %v327 = vld [vmem:[%s304 + $0x58] sm:$0xf]
        %v328 = vld [vmem:[%s304 + $0x5c] sm:$0x1]
        %vm329 = vsmask.f32 3328
        %vm330 = vsmask.f32 7440
        %vm331 = vmor %vm329, %vm330
        %v333 = vshrl.u32 %v305, 16
        %v335 = vrot.slane %v333, 4
        %v336 = vshll.u32 %v305, 16
        %v338 = vrot.slane %v336, 5
        %v339 = vor.u32 %v335, %v338
        %v340 = vrot.slane %v339, 4
        %v342 = vshll.u32 %v306, 16
        %v344 = vrot.slane %v342, 5
        %v345 = vsel %vm331, %v340, %v344
        %v346 = vshrl.u32 %v306, 16
        %v348 = vrot.slane %v346, 4
        %v349 = vor.u32 %v348, %v344
        %v350 = vrot.slane %v349, 4
        %v352 = vshll.u32 %v307, 16
        %v354 = vrot.slane %v352, 5
        %v355 = vsel %vm331, %v350, %v354
        %v357 = vshrl.u32 %v308, 16
        %v359 = vrot.slane %v357, 4
        %v360 = vshll.u32 %v308, 16
        %v362 = vrot.slane %v360, 5
        %v363 = vor.u32 %v359, %v362
        %v364 = vrot.slane %v363, 4
        %v366 = vshll.u32 %v309, 16
        %v368 = vrot.slane %v366, 5
        %v369 = vsel %vm331, %v364, %v368
        %v370 = vshrl.u32 %v309, 16
        %v372 = vrot.slane %v370, 4
        %v373 = vor.u32 %v372, %v368
        %v374 = vrot.slane %v373, 4
        %v376 = vshll.u32 %v310, 16
        %v378 = vrot.slane %v376, 5
        %v379 = vsel %vm331, %v374, %v378
        %v381 = vshrl.u32 %v311, 16
        %v383 = vrot.slane %v381, 4
        %v384 = vshll.u32 %v311, 16
        %v386 = vrot.slane %v384, 5
        %v387 = vor.u32 %v383, %v386
        %v388 = vrot.slane %v387, 4
        %v390 = vshll.u32 %v312, 16
        %v392 = vrot.slane %v390, 5
        %v393 = vsel %vm331, %v388, %v392
        %v394 = vshrl.u32 %v312, 16
        %v396 = vrot.slane %v394, 4
        %v397 = vor.u32 %v396, %v392
        %v398 = vrot.slane %v397, 4
        %v400 = vshll.u32 %v313, 16
        %v402 = vrot.slane %v400, 5
        %v403 = vsel %vm331, %v398, %v402
        %v405 = vshrl.u32 %v314, 16
        %v407 = vrot.slane %v405, 4
        %v408 = vshll.u32 %v314, 16
        %v410 = vrot.slane %v408, 5
        %v411 = vor.u32 %v407, %v410
        %v412 = vrot.slane %v411, 4
        %v414 = vshll.u32 %v315, 16
        %v416 = vrot.slane %v414, 5
        %v417 = vsel %vm331, %v412, %v416
        %v418 = vshrl.u32 %v315, 16
        %v420 = vrot.slane %v418, 4
        %v421 = vor.u32 %v420, %v416
        %v422 = vrot.slane %v421, 4
        %v424 = vshll.u32 %v316, 16
        %v426 = vrot.slane %v424, 5
        %v427 = vsel %vm331, %v422, %v426
        %v429 = vshrl.u32 %v317, 16
        %v431 = vrot.slane %v429, 4
        %v432 = vshll.u32 %v317, 16
        %v434 = vrot.slane %v432, 5
        %v435 = vor.u32 %v431, %v434
        %v436 = vrot.slane %v435, 4
        %v438 = vshll.u32 %v318, 16
        %v440 = vrot.slane %v438, 5
        %v441 = vsel %vm331, %v436, %v440
        %v442 = vshrl.u32 %v318, 16
        %v444 = vrot.slane %v442, 4
        %v445 = vor.u32 %v444, %v440
        %v446 = vrot.slane %v445, 4
        %v448 = vshll.u32 %v319, 16
        %v450 = vrot.slane %v448, 5
        %v451 = vsel %vm331, %v446, %v450
        %v453 = vshrl.u32 %v320, 16
        %v455 = vrot.slane %v453, 4
        %v456 = vshll.u32 %v320, 16
        %v458 = vrot.slane %v456, 5
        %v459 = vor.u32 %v455, %v458
        %v460 = vrot.slane %v459, 4
        %v462 = vshll.u32 %v321, 16
        %v464 = vrot.slane %v462, 5
        %v465 = vsel %vm331, %v460, %v464
        %v466 = vshrl.u32 %v321, 16
        %v468 = vrot.slane %v466, 4
        %v469 = vor.u32 %v468, %v464
        %v470 = vrot.slane %v469, 4
        %v472 = vshll.u32 %v322, 16
        %v474 = vrot.slane %v472, 5
        %v475 = vsel %vm331, %v470, %v474
        %v477 = vshrl.u32 %v323, 16
        %v479 = vrot.slane %v477, 4
        %v480 = vshll.u32 %v323, 16
        %v482 = vrot.slane %v480, 5
        %v483 = vor.u32 %v479, %v482
        %v484 = vrot.slane %v483, 4
        %v486 = vshll.u32 %v324, 16
        %v488 = vrot.slane %v486, 5
        %v489 = vsel %vm331, %v484, %v488
        %v490 = vshrl.u32 %v324, 16
        %v492 = vrot.slane %v490, 4
        %v493 = vor.u32 %v492, %v488
        %v494 = vrot.slane %v493, 4
        %v496 = vshll.u32 %v325, 16
        %v498 = vrot.slane %v496, 5
        %v499 = vsel %vm331, %v494, %v498
        %v501 = vshrl.u32 %v326, 16
        %v503 = vrot.slane %v501, 4
        %v504 = vshll.u32 %v326, 16
        %v506 = vrot.slane %v504, 5
        %v507 = vor.u32 %v503, %v506
        %v508 = vrot.slane %v507, 4
        %v510 = vshll.u32 %v327, 16
        %v512 = vrot.slane %v510, 5
        %v513 = vsel %vm331, %v508, %v512
        %v514 = vshrl.u32 %v327, 16
        %v516 = vrot.slane %v514, 4
        %v517 = vor.u32 %v516, %v512
        %v518 = vrot.slane %v517, 4
        %v520 = vshll.u32 %v328, 16
        %v522 = vrot.slane %v520, 5
        %v523 = vsel %vm331, %v518, %v522
        %v540 = vunpack.c.l.bf16 %v345
        %v541 = vunpack.c.l.bf16 %v355
        %v542 = vunpack.c.l.bf16 %v369
        %v543 = vunpack.c.l.bf16 %v379
        %v544 = vunpack.c.l.bf16 %v393
        %v545 = vunpack.c.l.bf16 %v403
        %v546 = vunpack.c.l.bf16 %v417
        %v547 = vunpack.c.l.bf16 %v427
        %v548 = vunpack.c.l.bf16 %v441
        %v549 = vunpack.c.l.bf16 %v451
        %v550 = vunpack.c.l.bf16 %v465
        %v551 = vunpack.c.l.bf16 %v475
        %v552 = vunpack.c.l.bf16 %v489
        %v553 = vunpack.c.l.bf16 %v499
        %v554 = vunpack.c.l.bf16 %v513
        %v555 = vunpack.c.l.bf16 %v523
        %v556 = vld [vmem:[%s1] sm:$0xff]
        %v557 = vld [vmem:[%s1 + $0x8] sm:$0xff]
        %v558 = vld [vmem:[%s1 + $0x10] sm:$0xff]
        %v559 = vld [vmem:[%s1 + $0x18] sm:$0xff]
        %v560 = vld [vmem:[%s1 + $0x20] sm:$0xff]
        %v561 = vld [vmem:[%s1 + $0x28] sm:$0xff]
        %v562 = vld [vmem:[%s1 + $0x30] sm:$0xff]
        %v563 = vld [vmem:[%s1 + $0x38] sm:$0xff]
        %v564 = vld [vmem:[%s1 + $0x40] sm:$0xff]
        %v565 = vld [vmem:[%s1 + $0x48] sm:$0xff]
        %v566 = vld [vmem:[%s1 + $0x50] sm:$0xff]
        %v567 = vld [vmem:[%s1 + $0x58] sm:$0xff]
        %v568 = vld [vmem:[%s1 + $0x60] sm:$0xff]
        %v569 = vld [vmem:[%s1 + $0x68] sm:$0xff]
        %v570 = vld [vmem:[%s1 + $0x70] sm:$0xff]
        %v571 = vld [vmem:[%s1 + $0x78] sm:$0xff]
        %572 = vmatprep.subr.mxu0 0.0
        %573 = vmatpush1.msra.mxu0 %v556
        %574 = vmatprep.subr.mxu0 0.0
        %575 = vmatpush1.msra.mxu0 %v557
        %576 = vmatprep.subr.mxu0 0.0
        %577 = vmatpush1.msra.mxu0 %v558
        %578 = vmatprep.subr.mxu0 0.0
        %579 = vmatpush1.msra.mxu0 %v559
        %580 = vmatprep.subr.mxu0 0.0
        %581 = vmatpush1.msra.mxu0 %v560
        %582 = vmatprep.subr.mxu0 0.0
        %583 = vmatpush1.msra.mxu0 %v561
        %584 = vmatprep.subr.mxu0 0.0
        %585 = vmatpush1.msra.mxu0 %v562
        %586 = vmatprep.subr.mxu0 0.0
        %587 = vmatpush1.msra.mxu0 %v563
        %588 = vmatprep.subr.mxu0 0.0
        %589 = vmatpush1.msra.mxu0 %v564
        %590 = vmatprep.subr.mxu0 0.0
        %591 = vmatpush1.msra.mxu0 %v565
        %592 = vmatprep.subr.mxu0 0.0
        %593 = vmatpush1.msra.mxu0 %v566
        %594 = vmatprep.subr.mxu0 0.0
        %595 = vmatpush1.msra.mxu0 %v567
        %596 = vmatprep.subr.mxu0 0.0
        %597 = vmatpush1.msra.mxu0 %v568
        %598 = vmatprep.subr.mxu0 0.0
        %599 = vmatpush1.msra.mxu0 %v569
        %600 = vmatprep.subr.mxu0 0.0
        %601 = vmatpush1.msra.mxu0 %v570
        %602 = vmatprep.subr.mxu0 0.0
        %603 = vmatpush1.msra.mxu0 %v571
        %604 = vmatprep.subr.mxu0 0.0
        %605 = vmatpush1.msra.mxu0 0.0
        %606 = vmatprep.subr.mxu0 0.0
        %607 = vmatpush1.msra.mxu0 0.0
        %608 = vmatprep.subr.mxu0 0.0
        %609 = vmatpush1.msra.mxu0 0.0
        %610 = vmatprep.subr.mxu0 0.0
        %611 = vmatpush1.msra.mxu0 0.0
        %612 = vmatprep.subr.mxu0 0.0
        %613 = vmatpush1.msra.mxu0 0.0
        %614 = vmatprep.subr.mxu0 0.0
        %615 = vmatpush1.msra.mxu0 0.0
        %616 = vmatprep.subr.mxu0 0.0
        %617 = vmatpush1.msra.mxu0 0.0
        %618 = vmatprep.subr.mxu0 0.0
        %619 = vmatpush1.msra.mxu0 0.0
        %620 = vmatprep.subr.mxu0 0.0
        %621 = vmatpush1.msra.mxu0 0.0
        %622 = vmatprep.subr.mxu0 0.0
        %623 = vmatpush1.msra.mxu0 0.0
        %624 = vmatprep.subr.mxu0 0.0
        %625 = vmatpush1.msra.mxu0 0.0
        %626 = vmatprep.subr.mxu0 0.0
        %627 = vmatpush1.msra.mxu0 0.0
        %628 = vmatprep.subr.mxu0 0.0
        %629 = vmatpush1.msra.mxu0 0.0
        %630 = vmatprep.subr.mxu0 0.0
        %631 = vmatpush1.msra.mxu0 0.0
        %632 = vmatprep.subr.mxu0 0.0
        %633 = vmatpush1.msra.mxu0 0.0
        %634 = vmatprep.subr.mxu0 0.0
        %635 = vmatpush1.msra.mxu0 0.0
        %636 = vmatprep.mubr.f32.mxu0 0.0
        %637 = vmatmul.mubr.f32.gmra.mrb[0].mxu0 %v540
        %v638 = vpop.f32.mrb[0].mxu0
        %v639 = vadd.f32 0.0, %v638
        %v640 = vpop.f32.mrb[0].mxu0
        %641 = vmatprep.mubr.f32.mxu0 0.0
        %642 = vmatmul.mubr.f32.gmra.mrb[0].mxu0 %v541
        %v643 = vpop.f32.mrb[0].mxu0
        %v644 = vadd.f32 0.0, %v643
        %v645 = vpop.f32.mrb[0].mxu0
        %646 = vmatprep.mubr.f32.mxu0 0.0
        %647 = vmatmul.mubr.f32.gmra.mrb[0].mxu0 %v542
        %v648 = vpop.f32.mrb[0].mxu0
        %v649 = vadd.f32 0.0, %v648
        %v650 = vpop.f32.mrb[0].mxu0
        %651 = vmatprep.mubr.f32.mxu0 0.0
        %652 = vmatmul.mubr.f32.gmra.mrb[0].mxu0 %v543
        %v653 = vpop.f32.mrb[0].mxu0
        %v654 = vadd.f32 0.0, %v653
        %v655 = vpop.f32.mrb[0].mxu0
        %656 = vmatprep.mubr.f32.mxu0 0.0
        %657 = vmatmul.mubr.f32.gmra.mrb[0].mxu0 %v544
        %v658 = vpop.f32.mrb[0].mxu0
        %v659 = vadd.f32 0.0, %v658
        %v660 = vpop.f32.mrb[0].mxu0
        %661 = vmatprep.mubr.f32.mxu0 0.0
        %662 = vmatmul.mubr.f32.gmra.mrb[0].mxu0 %v545
        %v663 = vpop.f32.mrb[0].mxu0
        %v664 = vadd.f32 0.0, %v663
        %v665 = vpop.f32.mrb[0].mxu0
        %666 = vmatprep.mubr.f32.mxu0 0.0
        %667 = vmatmul.mubr.f32.gmra.mrb[0].mxu0 %v546
        %v668 = vpop.f32.mrb[0].mxu0
        %v669 = vadd.f32 0.0, %v668
        %v670 = vpop.f32.mrb[0].mxu0
        %671 = vmatprep.mubr.f32.mxu0 0.0
        %672 = vmatmul.mubr.f32.gmra.mrb[0].mxu0 %v547
        %v673 = vpop.f32.mrb[0].mxu0
        %v674 = vadd.f32 0.0, %v673
        %v675 = vpop.f32.mrb[0].mxu0
        %676 = vmatprep.mubr.f32.mxu0 0.0
        %677 = vmatmul.mubr.f32.gmra.mrb[0].mxu0 %v548
        %v678 = vpop.f32.mrb[0].mxu0
        %v679 = vadd.f32 0.0, %v678
        %v680 = vpop.f32.mrb[0].mxu0
        %681 = vmatprep.mubr.f32.mxu0 0.0
        %682 = vmatmul.mubr.f32.gmra.mrb[0].mxu0 %v549
        %v683 = vpop.f32.mrb[0].mxu0
        %v684 = vadd.f32 0.0, %v683
        %v685 = vpop.f32.mrb[0].mxu0
        %686 = vmatprep.mubr.f32.mxu0 0.0
        %687 = vmatmul.mubr.f32.gmra.mrb[0].mxu0 %v550
        %v688 = vpop.f32.mrb[0].mxu0
        %v689 = vadd.f32 0.0, %v688
        %v690 = vpop.f32.mrb[0].mxu0
        %691 = vmatprep.mubr.f32.mxu0 0.0
        %692 = vmatmul.mubr.f32.gmra.mrb[0].mxu0 %v551
        %v693 = vpop.f32.mrb[0].mxu0
        %v694 = vadd.f32 0.0, %v693
        %v695 = vpop.f32.mrb[0].mxu0
        %696 = vmatprep.mubr.f32.mxu0 0.0
        %697 = vmatmul.mubr.f32.gmra.mrb[0].mxu0 %v552
        %v698 = vpop.f32.mrb[0].mxu0
        %v699 = vadd.f32 0.0, %v698
        %v700 = vpop.f32.mrb[0].mxu0
        %701 = vmatprep.mubr.f32.mxu0 0.0
        %702 = vmatmul.mubr.f32.gmra.mrb[0].mxu0 %v553
        %v703 = vpop.f32.mrb[0].mxu0
        %v704 = vadd.f32 0.0, %v703
        %v705 = vpop.f32.mrb[0].mxu0
        %706 = vmatprep.mubr.f32.mxu0 0.0
        %707 = vmatmul.mubr.f32.gmra.mrb[0].mxu0 %v554
        %v708 = vpop.f32.mrb[0].mxu0
        %v709 = vadd.f32 0.0, %v708
        %v710 = vpop.f32.mrb[0].mxu0
        %711 = vmatprep.mubr.f32.mxu0 0.0
        %712 = vmatmul.mubr.f32.gmra.mrb[0].mxu0 %v555
        %v713 = vpop.f32.mrb[0].mxu0
        %v714 = vadd.f32 0.0, %v713
        %v715 = vpop.f32.mrb[0].mxu0
        %716 = vdwg.mxu0
        %v717 = vld [vmem:[%s2] sm:$0x1]
        %v719 = vlaneseq
        %v720 = vshrl.u32 %v719, 7
        %v721 = vsub.s32 0, %v720
        %v722 = vrot.slane %v717, %v721
        %v724 = vmul.f32 %v639, %v722
        %v725 = vmul.f32 %v644, %v722
        %v726 = vmul.f32 %v649, %v722
        %v727 = vmul.f32 %v654, %v722
        %v728 = vmul.f32 %v659, %v722
        %v729 = vmul.f32 %v664, %v722
        %v730 = vmul.f32 %v669, %v722
        %v731 = vmul.f32 %v674, %v722
        %v732 = vmul.f32 %v679, %v722
        %v733 = vmul.f32 %v684, %v722
        %v734 = vmul.f32 %v689, %v722
        %v735 = vmul.f32 %v694, %v722
        %v736 = vmul.f32 %v699, %v722
        %v737 = vmul.f32 %v704, %v722
        %v738 = vmul.f32 %v709, %v722
        %v739 = vmul.f32 %v714, %v722
        %v740 = vld [vmem:[%s3] sm:$0x1]
        %v742 = vlaneseq
        %v743 = vshrl.u32 %v742, 7
        %v744 = vsub.s32 0, %v743
        %v745 = vrot.slane %v740, %v744
        %v747 = vadd.f32 %v724, %v745
        %v748 = vadd.f32 %v725, %v745
        %v749 = vadd.f32 %v726, %v745
        %v750 = vadd.f32 %v727, %v745
        %v751 = vadd.f32 %v728, %v745
        %v752 = vadd.f32 %v729, %v745
        %v753 = vadd.f32 %v730, %v745
        %v754 = vadd.f32 %v731, %v745
        %v755 = vadd.f32 %v732, %v745
        %v756 = vadd.f32 %v733, %v745
        %v757 = vadd.f32 %v734, %v745
        %v758 = vadd.f32 %v735, %v745
        %v759 = vadd.f32 %v736, %v745
        %v760 = vadd.f32 %v737, %v745
        %v761 = vadd.f32 %v738, %v745
        %v762 = vadd.f32 %v739, %v745
        %v763 = vmax.f32 %v747, 0.0
        %v764 = vmax.f32 %v748, 0.0
        %v765 = vmax.f32 %v749, 0.0
        %v766 = vmax.f32 %v750, 0.0
        %v767 = vmax.f32 %v751, 0.0
        %v768 = vmax.f32 %v752, 0.0
        %v769 = vmax.f32 %v753, 0.0
        %v770 = vmax.f32 %v754, 0.0
        %v771 = vmax.f32 %v755, 0.0
        %v772 = vmax.f32 %v756, 0.0
        %v773 = vmax.f32 %v757, 0.0
        %v774 = vmax.f32 %v758, 0.0
        %v775 = vmax.f32 %v759, 0.0
        %v776 = vmax.f32 %v760, 0.0
        %v777 = vmax.f32 %v761, 0.0
        %v778 = vmax.f32 %v762, 0.0
        %v779 = vld [vmem:[%s4] sm:$0xff]
        %v780 = vld [vmem:[%s4 + $0x8] sm:$0xff]
        %v781 = vld [vmem:[%s4 + $0x10] sm:$0xff]
        %v782 = vld [vmem:[%s4 + $0x18] sm:$0xff]
        %v783 = vld [vmem:[%s4 + $0x20] sm:$0xff]
        %v784 = vld [vmem:[%s4 + $0x28] sm:$0xff]
        %v785 = vld [vmem:[%s4 + $0x30] sm:$0xff]
        %v786 = vld [vmem:[%s4 + $0x38] sm:$0xff]
        %v787 = vld [vmem:[%s4 + $0x40] sm:$0xff]
        %v788 = vld [vmem:[%s4 + $0x48] sm:$0xff]
        %v789 = vld [vmem:[%s4 + $0x50] sm:$0xff]
        %v790 = vld [vmem:[%s4 + $0x58] sm:$0xff]
        %v791 = vld [vmem:[%s4 + $0x60] sm:$0xff]
        %v792 = vld [vmem:[%s4 + $0x68] sm:$0xff]
        %v793 = vld [vmem:[%s4 + $0x70] sm:$0xff]
        %v794 = vld [vmem:[%s4 + $0x78] sm:$0xff]
        %v795 = vld [vmem:[%s4 + $0x80] sm:$0xff]
        %v796 = vld [vmem:[%s4 + $0x88] sm:$0xff]
        %v797 = vld [vmem:[%s4 + $0x90] sm:$0xff]
        %v798 = vld [vmem:[%s4 + $0x98] sm:$0xff]
        %v799 = vld [vmem:[%s4 + $0xa0] sm:$0xff]
        %v800 = vld [vmem:[%s4 + $0xa8] sm:$0xff]
        %v801 = vld [vmem:[%s4 + $0xb0] sm:$0xff]
        %v802 = vld [vmem:[%s4 + $0xb8] sm:$0xff]
        %v803 = vld [vmem:[%s4 + $0xc0] sm:$0xff]
        %v804 = vld [vmem:[%s4 + $0xc8] sm:$0xff]
        %v805 = vld [vmem:[%s4 + $0xd0] sm:$0xff]
        %v806 = vld [vmem:[%s4 + $0xd8] sm:$0xff]
        %v807 = vld [vmem:[%s4 + $0xe0] sm:$0xff]
        %v808 = vld [vmem:[%s4 + $0xe8] sm:$0xff]
        %v809 = vld [vmem:[%s4 + $0xf0] sm:$0xff]
        %v810 = vld [vmem:[%s4 + $0xf8] sm:$0xff]
        %v811 = vld [vmem:[%s4 + $0x100] sm:$0xff]
        %v812 = vld [vmem:[%s4 + $0x108] sm:$0xff]
        %v813 = vld [vmem:[%s4 + $0x110] sm:$0xff]
        %v814 = vld [vmem:[%s4 + $0x118] sm:$0xff]
        %v815 = vld [vmem:[%s5] sm:$0xff]
        %v816 = vld [vmem:[%s5 + $0x8] sm:$0x1]
        %v819 = vlaneseq
        %v820 = vshrl.u32 %v819, 7
        %v821 = vsub.s32 0, %v820
        %v822 = vrot.slane %v815, %v821
        %v823 = vlaneseq
        %v824 = vshrl.u32 %v823, 7
        %v825 = vsub.s32 1, %v824
        %v826 = vrot.slane %v815, %v825
        %v827 = vlaneseq
        %v828 = vshrl.u32 %v827, 7
        %v829 = vsub.s32 2, %v828
        %v830 = vrot.slane %v815, %v829
        %v831 = vlaneseq
        %v832 = vshrl.u32 %v831, 7
        %v833 = vsub.s32 3, %v832
        %v834 = vrot.slane %v815, %v833
        %v835 = vlaneseq
        %v836 = vshrl.u32 %v835, 7
        %v837 = vsub.s32 4, %v836
        %v838 = vrot.slane %v815, %v837
        %v839 = vlaneseq
        %v840 = vshrl.u32 %v839, 7
        %v841 = vsub.s32 5, %v840
        %v842 = vrot.slane %v815, %v841
        %v843 = vlaneseq
        %v844 = vshrl.u32 %v843, 7
        %v845 = vsub.s32 6, %v844
        %v846 = vrot.slane %v815, %v845
        %v847 = vlaneseq
        %v848 = vshrl.u32 %v847, 7
        %v849 = vsub.s32 7, %v848
        %v850 = vrot.slane %v815, %v849
        %v851 = vlaneseq
        %v852 = vshrl.u32 %v851, 7
        %v853 = vsub.s32 0, %v852
        %v854 = vrot.slane %v816, %v853
        %vm864 = vcmask 261120
        %v866 = vsel %vm864, %v763, 0
        %v869 = vsel %vm864, %v764, 0
        %v872 = vsel %vm864, %v765, 0
        %v875 = vsel %vm864, %v766, 0
        %v878 = vsel %vm864, %v767, 0
        %v881 = vsel %vm864, %v768, 0
        %v884 = vsel %vm864, %v769, 0
        %v887 = vsel %vm864, %v770, 0
        %v890 = vsel %vm864, %v771, 0
        %v893 = vsel %vm864, %v772, 0
        %v896 = vsel %vm864, %v773, 0
        %v899 = vsel %vm864, %v774, 0
        %v902 = vsel %vm864, %v775, 0
        %v905 = vsel %vm864, %v776, 0
        %v908 = vsel %vm864, %v777, 0
        %v911 = vsel %vm864, %v778, 0
        %913 = vmatprep.subr.mxu0 %v780
        %914 = vmatpush1.msra.mxu0 %v779
        %915 = vmatprep.subr.mxu0 %v789
        %916 = vmatpush1.msra.mxu0 %v788
        %917 = vmatprep.subr.mxu0 %v798
        %918 = vmatpush1.msra.mxu0 %v797
        %919 = vmatprep.subr.mxu0 %v807
        %920 = vmatpush1.msra.mxu0 %v806
        %921 = vmatprep.subr.mxu0 0.0
        %922 = vmatpush1.msra.mxu0 0.0
        %923 = vmatprep.subr.mxu0 0.0
        %924 = vmatpush1.msra.mxu0 0.0
        %925 = vmatprep.subr.mxu0 0.0
        %926 = vmatpush1.msra.mxu0 0.0
        %927 = vmatprep.subr.mxu0 0.0
        %928 = vmatpush1.msra.mxu0 0.0
        %929 = vmatprep.subr.mxu0 0.0
        %930 = vmatpush1.msra.mxu0 0.0
        %931 = vmatprep.subr.mxu0 0.0
        %932 = vmatpush1.msra.mxu0 0.0
        %933 = vmatprep.subr.mxu0 0.0
        %934 = vmatpush1.msra.mxu0 0.0
        %935 = vmatprep.subr.mxu0 0.0
        %936 = vmatpush1.msra.mxu0 0.0
        %937 = vmatprep.subr.mxu0 0.0
        %938 = vmatpush1.msra.mxu0 0.0
        %939 = vmatprep.subr.mxu0 0.0
        %940 = vmatpush1.msra.mxu0 0.0
        %941 = vmatprep.subr.mxu0 0.0
        %942 = vmatpush1.msra.mxu0 0.0
        %943 = vmatprep.subr.mxu0 0.0
        %944 = vmatpush1.msra.mxu0 0.0
        %945 = vmatprep.subr.mxu0 0.0
        %946 = vmatpush1.msra.mxu0 0.0
        %947 = vmatprep.subr.mxu0 0.0
        %948 = vmatpush1.msra.mxu0 0.0
        %949 = vmatprep.subr.mxu0 0.0
        %950 = vmatpush1.msra.mxu0 0.0
        %951 = vmatprep.subr.mxu0 0.0
        %952 = vmatpush1.msra.mxu0 0.0
        %953 = vmatprep.subr.mxu0 0.0
        %954 = vmatpush1.msra.mxu0 0.0
        %955 = vmatprep.subr.mxu0 0.0
        %956 = vmatpush1.msra.mxu0 0.0
        %957 = vmatprep.subr.mxu0 0.0
        %958 = vmatpush1.msra.mxu0 0.0
        %959 = vmatprep.subr.mxu0 0.0
        %960 = vmatpush1.msra.mxu0 0.0
        %961 = vmatprep.subr.mxu0 0.0
        %962 = vmatpush1.msra.mxu0 0.0
        %963 = vmatprep.subr.mxu0 0.0
        %964 = vmatpush1.msra.mxu0 0.0
        %965 = vmatprep.subr.mxu0 0.0
        %966 = vmatpush1.msra.mxu0 0.0
        %967 = vmatprep.subr.mxu0 0.0
        %968 = vmatpush1.msra.mxu0 0.0
        %969 = vmatprep.subr.mxu0 0.0
        %970 = vmatpush1.msra.mxu0 0.0
        %971 = vmatprep.subr.mxu0 0.0
        %972 = vmatpush1.msra.mxu0 0.0
        %973 = vmatprep.subr.mxu0 0.0
        %974 = vmatpush1.msra.mxu0 0.0
        %975 = vmatprep.subr.mxu0 0.0
        %976 = vmatpush1.msra.mxu0 0.0
        %977 = vmatprep.mubr.f32.mxu0 0.0
        %978 = vmatmul.mubr.f32.gmra.mrb[0].mxu0 %v866
        %v979 = vpop.f32.mrb[0].mxu0
        %v980 = vadd.f32 %v822, %v979
        %v981 = vpop.f32.mrb[0].mxu0
        %v982 = vadd.f32 %v826, %v981
        %983 = vmatprep.mubr.f32.mxu0 0.0
        %984 = vmatmul.mubr.f32.gmra.mrb[0].mxu0 %v869
        %v985 = vpop.f32.mrb[0].mxu0
        %v986 = vadd.f32 %v822, %v985
        %v987 = vpop.f32.mrb[0].mxu0
        %v988 = vadd.f32 %v826, %v987
        %989 = vmatprep.mubr.f32.mxu0 0.0
        %990 = vmatmul.mubr.f32.gmra.mrb[0].mxu0 %v872
        %v991 = vpop.f32.mrb[0].mxu0
        %v992 = vadd.f32 %v822, %v991
        %v993 = vpop.f32.mrb[0].mxu0
        %v994 = vadd.f32 %v826, %v993
        %995 = vmatprep.mubr.f32.mxu0 0.0
        %996 = vmatmul.mubr.f32.gmra.mrb[0].mxu0 %v875
        %v997 = vpop.f32.mrb[0].mxu0
        %v998 = vadd.f32 %v822, %v997
        %v999 = vpop.f32.mrb[0].mxu0
        %v1000 = vadd.f32 %v826, %v999
        %1001 = vmatprep.mubr.f32.mxu0 0.0
        %1002 = vmatmul.mubr.f32.gmra.mrb[0].mxu0 %v878
        %v1003 = vpop.f32.mrb[0].mxu0
        %v1004 = vadd.f32 %v822, %v1003
        %v1005 = vpop.f32.mrb[0].mxu0
        %v1006 = vadd.f32 %v826, %v1005
        %1007 = vmatprep.mubr.f32.mxu0 0.0
        %1008 = vmatmul.mubr.f32.gmra.mrb[0].mxu0 %v881
        %v1009 = vpop.f32.mrb[0].mxu0
        %v1010 = vadd.f32 %v822, %v1009
        %v1011 = vpop.f32.mrb[0].mxu0
        %v1012 = vadd.f32 %v826, %v1011
        %1013 = vmatprep.mubr.f32.mxu0 0.0
        %1014 = vmatmul.mubr.f32.gmra.mrb[0].mxu0 %v884
        %v1015 = vpop.f32.mrb[0].mxu0
        %v1016 = vadd.f32 %v822, %v1015
        %v1017 = vpop.f32.mrb[0].mxu0
        %v1018 = vadd.f32 %v826, %v1017
        %1019 = vmatprep.mubr.f32.mxu0 0.0
        %1020 = vmatmul.mubr.f32.gmra.mrb[0].mxu0 %v887
        %v1021 = vpop.f32.mrb[0].mxu0
        %v1022 = vadd.f32 %v822, %v1021
        %v1023 = vpop.f32.mrb[0].mxu0
        %v1024 = vadd.f32 %v826, %v1023
        %1025 = vmatprep.mubr.f32.mxu0 0.0
        %1026 = vmatmul.mubr.f32.gmra.mrb[0].mxu0 %v890
        %v1027 = vpop.f32.mrb[0].mxu0
        %v1028 = vadd.f32 %v822, %v1027
        %v1029 = vpop.f32.mrb[0].mxu0
        %v1030 = vadd.f32 %v826, %v1029
        %1031 = vmatprep.mubr.f32.mxu0 0.0
        %1032 = vmatmul.mubr.f32.gmra.mrb[0].mxu0 %v893
        %v1033 = vpop.f32.mrb[0].mxu0
        %v1034 = vadd.f32 %v822, %v1033
        %v1035 = vpop.f32.mrb[0].mxu0
        %v1036 = vadd.f32 %v826, %v1035
        %1037 = vmatprep.mubr.f32.mxu0 0.0
        %1038 = vmatmul.mubr.f32.gmra.mrb[0].mxu0 %v896
        %v1039 = vpop.f32.mrb[0].mxu0
        %v1040 = vadd.f32 %v822, %v1039
        %v1041 = vpop.f32.mrb[0].mxu0
        %v1042 = vadd.f32 %v826, %v1041
        %1043 = vmatprep.mubr.f32.mxu0 0.0
        %1044 = vmatmul.mubr.f32.gmra.mrb[0].mxu0 %v899
        %v1045 = vpop.f32.mrb[0].mxu0
        %v1046 = vadd.f32 %v822, %v1045
        %v1047 = vpop.f32.mrb[0].mxu0
        %v1048 = vadd.f32 %v826, %v1047
        %1049 = vmatprep.mubr.f32.mxu0 0.0
        %1050 = vmatmul.mubr.f32.gmra.mrb[0].mxu0 %v902
        %v1051 = vpop.f32.mrb[0].mxu0
        %v1052 = vadd.f32 %v822, %v1051
        %v1053 = vpop.f32.mrb[0].mxu0
        %v1054 = vadd.f32 %v826, %v1053
        %1055 = vmatprep.mubr.f32.mxu0 0.0
        %1056 = vmatmul.mubr.f32.gmra.mrb[0].mxu0 %v905
        %v1057 = vpop.f32.mrb[0].mxu0
        %v1058 = vadd.f32 %v822, %v1057
        %v1059 = vpop.f32.mrb[0].mxu0
        %v1060 = vadd.f32 %v826, %v1059
        %1061 = vmatprep.mubr.f32.mxu0 0.0
        %1062 = vmatmul.mubr.f32.gmra.mrb[0].mxu0 %v908
        %v1063 = vpop.f32.mrb[0].mxu0
        %v1064 = vadd.f32 %v822, %v1063
        %v1065 = vpop.f32.mrb[0].mxu0
        %v1066 = vadd.f32 %v826, %v1065
        %1067 = vmatprep.mubr.f32.mxu0 0.0
        %1068 = vmatmul.mubr.f32.gmra.mrb[0].mxu0 %v911
        %v1069 = vpop.f32.mrb[0].mxu0
        %v1070 = vadd.f32 %v822, %v1069
        %v1071 = vpop.f32.mrb[0].mxu0
        %v1072 = vadd.f32 %v826, %v1071
        %1073 = vdwg.mxu0
        %1074 = vmatprep.subr.mxu0 %v782
        %1075 = vmatpush1.msra.mxu0 %v781
        %1076 = vmatprep.subr.mxu0 %v791
        %1077 = vmatpush1.msra.mxu0 %v790
        %1078 = vmatprep.subr.mxu0 %v800
        %1079 = vmatpush1.msra.mxu0 %v799
        %1080 = vmatprep.subr.mxu0 %v809
        %1081 = vmatpush1.msra.mxu0 %v808
        %1082 = vmatprep.subr.mxu0 0.0
        %1083 = vmatpush1.msra.mxu0 0.0
        %1084 = vmatprep.subr.mxu0 0.0
        %1085 = vmatpush1.msra.mxu0 0.0
        %1086 = vmatprep.subr.mxu0 0.0
        %1087 = vmatpush1.msra.mxu0 0.0
        %1088 = vmatprep.subr.mxu0 0.0
        %1089 = vmatpush1.msra.mxu0 0.0
        %1090 = vmatprep.subr.mxu0 0.0
        %1091 = vmatpush1.msra.mxu0 0.0
        %1092 = vmatprep.subr.mxu0 0.0
        %1093 = vmatpush1.msra.mxu0 0.0
        %1094 = vmatprep.subr.mxu0 0.0
        %1095 = vmatpush1.msra.mxu0 0.0
        %1096 = vmatprep.subr.mxu0 0.0
        %1097 = vmatpush1.msra.mxu0 0.0
        %1098 = vmatprep.subr.mxu0 0.0
        %1099 = vmatpush1.msra.mxu0 0.0
        %1100 = vmatprep.subr.mxu0 0.0
        %1101 = vmatpush1.msra.mxu0 0.0
        %1102 = vmatprep.subr.mxu0 0.0
        %1103 = vmatpush1.msra.mxu0 0.0
        %1104 = vmatprep.subr.mxu0 0.0
        %1105 = vmatpush1.msra.mxu0 0.0
        %1106 = vmatprep.subr.mxu0 0.0
        %1107 = vmatpush1.msra.mxu0 0.0
        %1108 = vmatprep.subr.mxu0 0.0
        %1109 = vmatpush1.msra.mxu0 0.0
        %1110 = vmatprep.subr.mxu0 0.0
        %1111 = vmatpush1.msra.mxu0 0.0
        %1112 = vmatprep.subr.mxu0 0.0
        %1113 = vmatpush1.msra.mxu0 0.0
        %1114 = vmatprep.subr.mxu0 0.0
        %1115 = vmatpush1.msra.mxu0 0.0
        %1116 = vmatprep.subr.mxu0 0.0
        %1117 = vmatpush1.msra.mxu0 0.0
        %1118 = vmatprep.subr.mxu0 0.0
        %1119 = vmatpush1.msra.mxu0 0.0
        %1120 = vmatprep.subr.mxu0 0.0
        %1121 = vmatpush1.msra.mxu0 0.0
        %1122 = vmatprep.subr.mxu0 0.0
        %1123 = vmatpush1.msra.mxu0 0.0
        %1124 = vmatprep.subr.mxu0 0.0
        %1125 = vmatpush1.msra.mxu0 0.0
        %1126 = vmatprep.subr.mxu0 0.0
        %1127 = vmatpush1.msra.mxu0 0.0
        %1128 = vmatprep.subr.mxu0 0.0
        %1129 = vmatpush1.msra.mxu0 0.0
        %1130 = vmatprep.subr.mxu0 0.0
        %1131 = vmatpush1.msra.mxu0 0.0
        %1132 = vmatprep.subr.mxu0 0.0
        %1133 = vmatpush1.msra.mxu0 0.0
        %1134 = vmatprep.subr.mxu0 0.0
        %1135 = vmatpush1.msra.mxu0 0.0
        %1136 = vmatprep.subr.mxu0 0.0
        %1137 = vmatpush1.msra.mxu0 0.0
        %1138 = vmatprep.mubr.f32.mxu0 0.0
        %1139 = vmatmul.mubr.f32.gmra.mrb[0].mxu0 %v866
        %v1140 = vpop.f32.mrb[0].mxu0
        %v1141 = vadd.f32 %v830, %v1140
        %v1142 = vpop.f32.mrb[0].mxu0
        %v1143 = vadd.f32 %v834, %v1142
        %1144 = vmatprep.mubr.f32.mxu0 0.0
        %1145 = vmatmul.mubr.f32.gmra.mrb[0].mxu0 %v869
        %v1146 = vpop.f32.mrb[0].mxu0
        %v1147 = vadd.f32 %v830, %v1146
        %v1148 = vpop.f32.mrb[0].mxu0
        %v1149 = vadd.f32 %v834, %v1148
        %1150 = vmatprep.mubr.f32.mxu0 0.0
        %1151 = vmatmul.mubr.f32.gmra.mrb[0].mxu0 %v872
        %v1152 = vpop.f32.mrb[0].mxu0
        %v1153 = vadd.f32 %v830, %v1152
        %v1154 = vpop.f32.mrb[0].mxu0
        %v1155 = vadd.f32 %v834, %v1154
        %1156 = vmatprep.mubr.f32.mxu0 0.0
        %1157 = vmatmul.mubr.f32.gmra.mrb[0].mxu0 %v875
        %v1158 = vpop.f32.mrb[0].mxu0
        %v1159 = vadd.f32 %v830, %v1158
        %v1160 = vpop.f32.mrb[0].mxu0
        %v1161 = vadd.f32 %v834, %v1160
        %1162 = vmatprep.mubr.f32.mxu0 0.0
        %1163 = vmatmul.mubr.f32.gmra.mrb[0].mxu0 %v878
        %v1164 = vpop.f32.mrb[0].mxu0
        %v1165 = vadd.f32 %v830, %v1164
        %v1166 = vpop.f32.mrb[0].mxu0
        %v1167 = vadd.f32 %v834, %v1166
        %1168 = vmatprep.mubr.f32.mxu0 0.0
        %1169 = vmatmul.mubr.f32.gmra.mrb[0].mxu0 %v881
        %v1170 = vpop.f32.mrb[0].mxu0
        %v1171 = vadd.f32 %v830, %v1170
        %v1172 = vpop.f32.mrb[0].mxu0
        %v1173 = vadd.f32 %v834, %v1172
        %1174 = vmatprep.mubr.f32.mxu0 0.0
        %1175 = vmatmul.mubr.f32.gmra.mrb[0].mxu0 %v884
        %v1176 = vpop.f32.mrb[0].mxu0
        %v1177 = vadd.f32 %v830, %v1176
        %v1178 = vpop.f32.mrb[0].mxu0
        %v1179 = vadd.f32 %v834, %v1178
        %1180 = vmatprep.mubr.f32.mxu0 0.0
        %1181 = vmatmul.mubr.f32.gmra.mrb[0].mxu0 %v887
        %v1182 = vpop.f32.mrb[0].mxu0
        %v1183 = vadd.f32 %v830, %v1182
        %v1184 = vpop.f32.mrb[0].mxu0
        %v1185 = vadd.f32 %v834, %v1184
        %1186 = vmatprep.mubr.f32.mxu0 0.0
        %1187 = vmatmul.mubr.f32.gmra.mrb[0].mxu0 %v890
        %v1188 = vpop.f32.mrb[0].mxu0
        %v1189 = vadd.f32 %v830, %v1188
        %v1190 = vpop.f32.mrb[0].mxu0
        %v1191 = vadd.f32 %v834, %v1190
        %1192 = vmatprep.mubr.f32.mxu0 0.0
        %1193 = vmatmul.mubr.f32.gmra.mrb[0].mxu0 %v893
        %v1194 = vpop.f32.mrb[0].mxu0
        %v1195 = vadd.f32 %v830, %v1194
        %v1196 = vpop.f32.mrb[0].mxu0
        %v1197 = vadd.f32 %v834, %v1196
        %1198 = vmatprep.mubr.f32.mxu0 0.0
        %1199 = vmatmul.mubr.f32.gmra.mrb[0].mxu0 %v896
        %v1200 = vpop.f32.mrb[0].mxu0
        %v1201 = vadd.f32 %v830, %v1200
        %v1202 = vpop.f32.mrb[0].mxu0
        %v1203 = vadd.f32 %v834, %v1202
        %1204 = vmatprep.mubr.f32.mxu0 0.0
        %1205 = vmatmul.mubr.f32.gmra.mrb[0].mxu0 %v899
        %v1206 = vpop.f32.mrb[0].mxu0
        %v1207 = vadd.f32 %v830, %v1206
        %v1208 = vpop.f32.mrb[0].mxu0
        %v1209 = vadd.f32 %v834, %v1208
        %1210 = vmatprep.mubr.f32.mxu0 0.0
        %1211 = vmatmul.mubr.f32.gmra.mrb[0].mxu0 %v902
        %v1212 = vpop.f32.mrb[0].mxu0
        %v1213 = vadd.f32 %v830, %v1212
        %v1214 = vpop.f32.mrb[0].mxu0
        %v1215 = vadd.f32 %v834, %v1214
        %1216 = vmatprep.mubr.f32.mxu0 0.0
        %1217 = vmatmul.mubr.f32.gmra.mrb[0].mxu0 %v905
        %v1218 = vpop.f32.mrb[0].mxu0
        %v1219 = vadd.f32 %v830, %v1218
        %v1220 = vpop.f32.mrb[0].mxu0
        %v1221 = vadd.f32 %v834, %v1220
        %1222 = vmatprep.mubr.f32.mxu0 0.0
        %1223 = vmatmul.mubr.f32.gmra.mrb[0].mxu0 %v908
        %v1224 = vpop.f32.mrb[0].mxu0
        %v1225 = vadd.f32 %v830, %v1224
        %v1226 = vpop.f32.mrb[0].mxu0
        %v1227 = vadd.f32 %v834, %v1226
        %1228 = vmatprep.mubr.f32.mxu0 0.0
        %1229 = vmatmul.mubr.f32.gmra.mrb[0].mxu0 %v911
        %v1230 = vpop.f32.mrb[0].mxu0
        %v1231 = vadd.f32 %v830, %v1230
        %v1232 = vpop.f32.mrb[0].mxu0
        %v1233 = vadd.f32 %v834, %v1232
        %1234 = vdwg.mxu0
        %1235 = vmatprep.subr.mxu0 %v784
        %1236 = vmatpush1.msra.mxu0 %v783
        %1237 = vmatprep.subr.mxu0 %v793
        %1238 = vmatpush1.msra.mxu0 %v792
        %1239 = vmatprep.subr.mxu0 %v802
        %1240 = vmatpush1.msra.mxu0 %v801
        %1241 = vmatprep.subr.mxu0 %v811
        %1242 = vmatpush1.msra.mxu0 %v810
        %1243 = vmatprep.subr.mxu0 0.0
        %1244 = vmatpush1.msra.mxu0 0.0
        %1245 = vmatprep.subr.mxu0 0.0
        %1246 = vmatpush1.msra.mxu0 0.0
        %1247 = vmatprep.subr.mxu0 0.0
        %1248 = vmatpush1.msra.mxu0 0.0
        %1249 = vmatprep.subr.mxu0 0.0
        %1250 = vmatpush1.msra.mxu0 0.0
        %1251 = vmatprep.subr.mxu0 0.0
        %1252 = vmatpush1.msra.mxu0 0.0
        %1253 = vmatprep.subr.mxu0 0.0
        %1254 = vmatpush1.msra.mxu0 0.0
        %1255 = vmatprep.subr.mxu0 0.0
        %1256 = vmatpush1.msra.mxu0 0.0
        %1257 = vmatprep.subr.mxu0 0.0
        %1258 = vmatpush1.msra.mxu0 0.0
        %1259 = vmatprep.subr.mxu0 0.0
        %1260 = vmatpush1.msra.mxu0 0.0
        %1261 = vmatprep.subr.mxu0 0.0
        %1262 = vmatpush1.msra.mxu0 0.0
        %1263 = vmatprep.subr.mxu0 0.0
        %1264 = vmatpush1.msra.mxu0 0.0
        %1265 = vmatprep.subr.mxu0 0.0
        %1266 = vmatpush1.msra.mxu0 0.0
        %1267 = vmatprep.subr.mxu0 0.0
        %1268 = vmatpush1.msra.mxu0 0.0
        %1269 = vmatprep.subr.mxu0 0.0
        %1270 = vmatpush1.msra.mxu0 0.0
        %1271 = vmatprep.subr.mxu0 0.0
        %1272 = vmatpush1.msra.mxu0 0.0
        %1273 = vmatprep.subr.mxu0 0.0
        %1274 = vmatpush1.msra.mxu0 0.0
        %1275 = vmatprep.subr.mxu0 0.0
        %1276 = vmatpush1.msra.mxu0 0.0
        %1277 = vmatprep.subr.mxu0 0.0
        %1278 = vmatpush1.msra.mxu0 0.0
        %1279 = vmatprep.subr.mxu0 0.0
        %1280 = vmatpush1.msra.mxu0 0.0
        %1281 = vmatprep.subr.mxu0 0.0
        %1282 = vmatpush1.msra.mxu0 0.0
        %1283 = vmatprep.subr.mxu0 0.0
        %1284 = vmatpush1.msra.mxu0 0.0
        %1285 = vmatprep.subr.mxu0 0.0
        %1286 = vmatpush1.msra.mxu0 0.0
        %1287 = vmatprep.subr.mxu0 0.0
        %1288 = vmatpush1.msra.mxu0 0.0
        %1289 = vmatprep.subr.mxu0 0.0
        %1290 = vmatpush1.msra.mxu0 0.0
        %1291 = vmatprep.subr.mxu0 0.0
        %1292 = vmatpush1.msra.mxu0 0.0
        %1293 = vmatprep.subr.mxu0 0.0
        %1294 = vmatpush1.msra.mxu0 0.0
        %1295 = vmatprep.subr.mxu0 0.0
        %1296 = vmatpush1.msra.mxu0 0.0
        %1297 = vmatprep.subr.mxu0 0.0
        %1298 = vmatpush1.msra.mxu0 0.0
        %1299 = vmatprep.mubr.f32.mxu0 0.0
        %1300 = vmatmul.mubr.f32.gmra.mrb[0].mxu0 %v866
        %v1301 = vpop.f32.mrb[0].mxu0
        %v1302 = vadd.f32 %v838, %v1301
        %v1303 = vpop.f32.mrb[0].mxu0
        %v1304 = vadd.f32 %v842, %v1303
        %1305 = vmatprep.mubr.f32.mxu0 0.0
        %1306 = vmatmul.mubr.f32.gmra.mrb[0].mxu0 %v869
        %v1307 = vpop.f32.mrb[0].mxu0
        %v1308 = vadd.f32 %v838, %v1307
        %v1309 = vpop.f32.mrb[0].mxu0
        %v1310 = vadd.f32 %v842, %v1309
        %1311 = vmatprep.mubr.f32.mxu0 0.0
        %1312 = vmatmul.mubr.f32.gmra.mrb[0].mxu0 %v872
        %v1313 = vpop.f32.mrb[0].mxu0
        %v1314 = vadd.f32 %v838, %v1313
        %v1315 = vpop.f32.mrb[0].mxu0
        %v1316 = vadd.f32 %v842, %v1315
        %1317 = vmatprep.mubr.f32.mxu0 0.0
        %1318 = vmatmul.mubr.f32.gmra.mrb[0].mxu0 %v875
        %v1319 = vpop.f32.mrb[0].mxu0
        %v1320 = vadd.f32 %v838, %v1319
        %v1321 = vpop.f32.mrb[0].mxu0
        %v1322 = vadd.f32 %v842, %v1321
        %1323 = vmatprep.mubr.f32.mxu0 0.0
        %1324 = vmatmul.mubr.f32.gmra.mrb[0].mxu0 %v878
        %v1325 = vpop.f32.mrb[0].mxu0
        %v1326 = vadd.f32 %v838, %v1325
        %v1327 = vpop.f32.mrb[0].mxu0
        %v1328 = vadd.f32 %v842, %v1327
        %1329 = vmatprep.mubr.f32.mxu0 0.0
        %1330 = vmatmul.mubr.f32.gmra.mrb[0].mxu0 %v881
        %v1331 = vpop.f32.mrb[0].mxu0
        %v1332 = vadd.f32 %v838, %v1331
        %v1333 = vpop.f32.mrb[0].mxu0
        %v1334 = vadd.f32 %v842, %v1333
        %1335 = vmatprep.mubr.f32.mxu0 0.0
        %1336 = vmatmul.mubr.f32.gmra.mrb[0].mxu0 %v884
        %v1337 = vpop.f32.mrb[0].mxu0
        %v1338 = vadd.f32 %v838, %v1337
        %v1339 = vpop.f32.mrb[0].mxu0
        %v1340 = vadd.f32 %v842, %v1339
        %1341 = vmatprep.mubr.f32.mxu0 0.0
        %1342 = vmatmul.mubr.f32.gmra.mrb[0].mxu0 %v887
        %v1343 = vpop.f32.mrb[0].mxu0
        %v1344 = vadd.f32 %v838, %v1343
        %v1345 = vpop.f32.mrb[0].mxu0
        %v1346 = vadd.f32 %v842, %v1345
        %1347 = vmatprep.mubr.f32.mxu0 0.0
        %1348 = vmatmul.mubr.f32.gmra.mrb[0].mxu0 %v890
        %v1349 = vpop.f32.mrb[0].mxu0
        %v1350 = vadd.f32 %v838, %v1349
        %v1351 = vpop.f32.mrb[0].mxu0
        %v1352 = vadd.f32 %v842, %v1351
        %1353 = vmatprep.mubr.f32.mxu0 0.0
        %1354 = vmatmul.mubr.f32.gmra.mrb[0].mxu0 %v893
        %v1355 = vpop.f32.mrb[0].mxu0
        %v1356 = vadd.f32 %v838, %v1355
        %v1357 = vpop.f32.mrb[0].mxu0
        %v1358 = vadd.f32 %v842, %v1357
        %1359 = vmatprep.mubr.f32.mxu0 0.0
        %1360 = vmatmul.mubr.f32.gmra.mrb[0].mxu0 %v896
        %v1361 = vpop.f32.mrb[0].mxu0
        %v1362 = vadd.f32 %v838, %v1361
        %v1363 = vpop.f32.mrb[0].mxu0
        %v1364 = vadd.f32 %v842, %v1363
        %1365 = vmatprep.mubr.f32.mxu0 0.0
        %1366 = vmatmul.mubr.f32.gmra.mrb[0].mxu0 %v899
        %v1367 = vpop.f32.mrb[0].mxu0
        %v1368 = vadd.f32 %v838, %v1367
        %v1369 = vpop.f32.mrb[0].mxu0
        %v1370 = vadd.f32 %v842, %v1369
        %1371 = vmatprep.mubr.f32.mxu0 0.0
        %1372 = vmatmul.mubr.f32.gmra.mrb[0].mxu0 %v902
        %v1373 = vpop.f32.mrb[0].mxu0
        %v1374 = vadd.f32 %v838, %v1373
        %v1375 = vpop.f32.mrb[0].mxu0
        %v1376 = vadd.f32 %v842, %v1375
        %1377 = vmatprep.mubr.f32.mxu0 0.0
        %1378 = vmatmul.mubr.f32.gmra.mrb[0].mxu0 %v905
        %v1379 = vpop.f32.mrb[0].mxu0
        %v1380 = vadd.f32 %v838, %v1379
        %v1381 = vpop.f32.mrb[0].mxu0
        %v1382 = vadd.f32 %v842, %v1381
        %1383 = vmatprep.mubr.f32.mxu0 0.0
        %1384 = vmatmul.mubr.f32.gmra.mrb[0].mxu0 %v908
        %v1385 = vpop.f32.mrb[0].mxu0
        %v1386 = vadd.f32 %v838, %v1385
        %v1387 = vpop.f32.mrb[0].mxu0
        %v1388 = vadd.f32 %v842, %v1387
        %1389 = vmatprep.mubr.f32.mxu0 0.0
        %1390 = vmatmul.mubr.f32.gmra.mrb[0].mxu0 %v911
        %v1391 = vpop.f32.mrb[0].mxu0
        %v1392 = vadd.f32 %v838, %v1391
        %v1393 = vpop.f32.mrb[0].mxu0
        %v1394 = vadd.f32 %v842, %v1393
        %1395 = vdwg.mxu0
        %1396 = vmatprep.subr.mxu0 %v786
        %1397 = vmatpush1.msra.mxu0 %v785
        %1398 = vmatprep.subr.mxu0 %v795
        %1399 = vmatpush1.msra.mxu0 %v794
        %1400 = vmatprep.subr.mxu0 %v804
        %1401 = vmatpush1.msra.mxu0 %v803
        %1402 = vmatprep.subr.mxu0 %v813
        %1403 = vmatpush1.msra.mxu0 %v812
        %1404 = vmatprep.subr.mxu0 0.0
        %1405 = vmatpush1.msra.mxu0 0.0
        %1406 = vmatprep.subr.mxu0 0.0
        %1407 = vmatpush1.msra.mxu0 0.0
        %1408 = vmatprep.subr.mxu0 0.0
        %1409 = vmatpush1.msra.mxu0 0.0
        %1410 = vmatprep.subr.mxu0 0.0
        %1411 = vmatpush1.msra.mxu0 0.0
        %1412 = vmatprep.subr.mxu0 0.0
        %1413 = vmatpush1.msra.mxu0 0.0
        %1414 = vmatprep.subr.mxu0 0.0
        %1415 = vmatpush1.msra.mxu0 0.0
        %1416 = vmatprep.subr.mxu0 0.0
        %1417 = vmatpush1.msra.mxu0 0.0
        %1418 = vmatprep.subr.mxu0 0.0
        %1419 = vmatpush1.msra.mxu0 0.0
        %1420 = vmatprep.subr.mxu0 0.0
        %1421 = vmatpush1.msra.mxu0 0.0
        %1422 = vmatprep.subr.mxu0 0.0
        %1423 = vmatpush1.msra.mxu0 0.0
        %1424 = vmatprep.subr.mxu0 0.0
        %1425 = vmatpush1.msra.mxu0 0.0
        %1426 = vmatprep.subr.mxu0 0.0
        %1427 = vmatpush1.msra.mxu0 0.0
        %1428 = vmatprep.subr.mxu0 0.0
        %1429 = vmatpush1.msra.mxu0 0.0
        %1430 = vmatprep.subr.mxu0 0.0
        %1431 = vmatpush1.msra.mxu0 0.0
        %1432 = vmatprep.subr.mxu0 0.0
        %1433 = vmatpush1.msra.mxu0 0.0
        %1434 = vmatprep.subr.mxu0 0.0
        %1435 = vmatpush1.msra.mxu0 0.0
        %1436 = vmatprep.subr.mxu0 0.0
        %1437 = vmatpush1.msra.mxu0 0.0
        %1438 = vmatprep.subr.mxu0 0.0
        %1439 = vmatpush1.msra.mxu0 0.0
        %1440 = vmatprep.subr.mxu0 0.0
        %1441 = vmatpush1.msra.mxu0 0.0
        %1442 = vmatprep.subr.mxu0 0.0
        %1443 = vmatpush1.msra.mxu0 0.0
        %1444 = vmatprep.subr.mxu0 0.0
        %1445 = vmatpush1.msra.mxu0 0.0
        %1446 = vmatprep.subr.mxu0 0.0
        %1447 = vmatpush1.msra.mxu0 0.0
        %1448 = vmatprep.subr.mxu0 0.0
        %1449 = vmatpush1.msra.mxu0 0.0
        %1450 = vmatprep.subr.mxu0 0.0
        %1451 = vmatpush1.msra.mxu0 0.0
        %1452 = vmatprep.subr.mxu0 0.0
        %1453 = vmatpush1.msra.mxu0 0.0
        %1454 = vmatprep.subr.mxu0 0.0
        %1455 = vmatpush1.msra.mxu0 0.0
        %1456 = vmatprep.subr.mxu0 0.0
        %1457 = vmatpush1.msra.mxu0 0.0
        %1458 = vmatprep.subr.mxu0 0.0
        %1459 = vmatpush1.msra.mxu0 0.0
        %1460 = vmatprep.mubr.f32.mxu0 0.0
        %1461 = vmatmul.mubr.f32.gmra.mrb[0].mxu0 %v866
        %v1462 = vpop.f32.mrb[0].mxu0
        %v1463 = vadd.f32 %v846, %v1462
        %v1464 = vpop.f32.mrb[0].mxu0
        %v1465 = vadd.f32 %v850, %v1464
        %1466 = vmatprep.mubr.f32.mxu0 0.0
        %1467 = vmatmul.mubr.f32.gmra.mrb[0].mxu0 %v869
        %v1468 = vpop.f32.mrb[0].mxu0
        %v1469 = vadd.f32 %v846, %v1468
        %v1470 = vpop.f32.mrb[0].mxu0
        %v1471 = vadd.f32 %v850, %v1470
        %1472 = vmatprep.mubr.f32.mxu0 0.0
        %1473 = vmatmul.mubr.f32.gmra.mrb[0].mxu0 %v872
        %v1474 = vpop.f32.mrb[0].mxu0
        %v1475 = vadd.f32 %v846, %v1474
        %v1476 = vpop.f32.mrb[0].mxu0
        %v1477 = vadd.f32 %v850, %v1476
        %1478 = vmatprep.mubr.f32.mxu0 0.0
        %1479 = vmatmul.mubr.f32.gmra.mrb[0].mxu0 %v875
        %v1480 = vpop.f32.mrb[0].mxu0
        %v1481 = vadd.f32 %v846, %v1480
        %v1482 = vpop.f32.mrb[0].mxu0
        %v1483 = vadd.f32 %v850, %v1482
        %1484 = vmatprep.mubr.f32.mxu0 0.0
        %1485 = vmatmul.mubr.f32.gmra.mrb[0].mxu0 %v878
        %v1486 = vpop.f32.mrb[0].mxu0
        %v1487 = vadd.f32 %v846, %v1486
        %v1488 = vpop.f32.mrb[0].mxu0
        %v1489 = vadd.f32 %v850, %v1488
        %1490 = vmatprep.mubr.f32.mxu0 0.0
        %1491 = vmatmul.mubr.f32.gmra.mrb[0].mxu0 %v881
        %v1492 = vpop.f32.mrb[0].mxu0
        %v1493 = vadd.f32 %v846, %v1492
        %v1494 = vpop.f32.mrb[0].mxu0
        %v1495 = vadd.f32 %v850, %v1494
        %1496 = vmatprep.mubr.f32.mxu0 0.0
        %1497 = vmatmul.mubr.f32.gmra.mrb[0].mxu0 %v884
        %v1498 = vpop.f32.mrb[0].mxu0
        %v1499 = vadd.f32 %v846, %v1498
        %v1500 = vpop.f32.mrb[0].mxu0
        %v1501 = vadd.f32 %v850, %v1500
        %1502 = vmatprep.mubr.f32.mxu0 0.0
        %1503 = vmatmul.mubr.f32.gmra.mrb[0].mxu0 %v887
        %v1504 = vpop.f32.mrb[0].mxu0
        %v1505 = vadd.f32 %v846, %v1504
        %v1506 = vpop.f32.mrb[0].mxu0
        %v1507 = vadd.f32 %v850, %v1506
        %1508 = vmatprep.mubr.f32.mxu0 0.0
        %1509 = vmatmul.mubr.f32.gmra.mrb[0].mxu0 %v890
        %v1510 = vpop.f32.mrb[0].mxu0
        %v1511 = vadd.f32 %v846, %v1510
        %v1512 = vpop.f32.mrb[0].mxu0
        %v1513 = vadd.f32 %v850, %v1512
        %1514 = vmatprep.mubr.f32.mxu0 0.0
        %1515 = vmatmul.mubr.f32.gmra.mrb[0].mxu0 %v893
        %v1516 = vpop.f32.mrb[0].mxu0
        %v1517 = vadd.f32 %v846, %v1516
        %v1518 = vpop.f32.mrb[0].mxu0
        %v1519 = vadd.f32 %v850, %v1518
        %1520 = vmatprep.mubr.f32.mxu0 0.0
        %1521 = vmatmul.mubr.f32.gmra.mrb[0].mxu0 %v896
        %v1522 = vpop.f32.mrb[0].mxu0
        %v1523 = vadd.f32 %v846, %v1522
        %v1524 = vpop.f32.mrb[0].mxu0
        %v1525 = vadd.f32 %v850, %v1524
        %1526 = vmatprep.mubr.f32.mxu0 0.0
        %1527 = vmatmul.mubr.f32.gmra.mrb[0].mxu0 %v899
        %v1528 = vpop.f32.mrb[0].mxu0
        %v1529 = vadd.f32 %v846, %v1528
        %v1530 = vpop.f32.mrb[0].mxu0
        %v1531 = vadd.f32 %v850, %v1530
        %1532 = vmatprep.mubr.f32.mxu0 0.0
        %1533 = vmatmul.mubr.f32.gmra.mrb[0].mxu0 %v902
        %v1534 = vpop.f32.mrb[0].mxu0
        %v1535 = vadd.f32 %v846, %v1534
        %v1536 = vpop.f32.mrb[0].mxu0
        %v1537 = vadd.f32 %v850, %v1536
        %1538 = vmatprep.mubr.f32.mxu0 0.0
        %1539 = vmatmul.mubr.f32.gmra.mrb[0].mxu0 %v905
        %v1540 = vpop.f32.mrb[0].mxu0
        %v1541 = vadd.f32 %v846, %v1540
        %v1542 = vpop.f32.mrb[0].mxu0
        %v1543 = vadd.f32 %v850, %v1542
        %1544 = vmatprep.mubr.f32.mxu0 0.0
        %1545 = vmatmul.mubr.f32.gmra.mrb[0].mxu0 %v908
        %v1546 = vpop.f32.mrb[0].mxu0
        %v1547 = vadd.f32 %v846, %v1546
        %v1548 = vpop.f32.mrb[0].mxu0
        %v1549 = vadd.f32 %v850, %v1548
        %1550 = vmatprep.mubr.f32.mxu0 0.0
        %1551 = vmatmul.mubr.f32.gmra.mrb[0].mxu0 %v911
        %v1552 = vpop.f32.mrb[0].mxu0
        %v1553 = vadd.f32 %v846, %v1552
        %v1554 = vpop.f32.mrb[0].mxu0
        %v1555 = vadd.f32 %v850, %v1554
        %1556 = vdwg.mxu0
        %1557 = vmatprep.subr.mxu0 0.0
        %1558 = vmatpush1.msra.mxu0 %v787
        %1559 = vmatprep.subr.mxu0 0.0
        %1560 = vmatpush1.msra.mxu0 %v796
        %1561 = vmatprep.subr.mxu0 0.0
        %1562 = vmatpush1.msra.mxu0 %v805
        %1563 = vmatprep.subr.mxu0 0.0
        %1564 = vmatpush1.msra.mxu0 %v814
        %1565 = vmatprep.subr.mxu0 0.0
        %1566 = vmatpush1.msra.mxu0 0.0
        %1567 = vmatprep.subr.mxu0 0.0
        %1568 = vmatpush1.msra.mxu0 0.0
        %1569 = vmatprep.subr.mxu0 0.0
        %1570 = vmatpush1.msra.mxu0 0.0
        %1571 = vmatprep.subr.mxu0 0.0
        %1572 = vmatpush1.msra.mxu0 0.0
        %1573 = vmatprep.subr.mxu0 0.0
        %1574 = vmatpush1.msra.mxu0 0.0
        %1575 = vmatprep.subr.mxu0 0.0
        %1576 = vmatpush1.msra.mxu0 0.0
        %1577 = vmatprep.subr.mxu0 0.0
        %1578 = vmatpush1.msra.mxu0 0.0
        %1579 = vmatprep.subr.mxu0 0.0
        %1580 = vmatpush1.msra.mxu0 0.0
        %1581 = vmatprep.subr.mxu0 0.0
        %1582 = vmatpush1.msra.mxu0 0.0
        %1583 = vmatprep.subr.mxu0 0.0
        %1584 = vmatpush1.msra.mxu0 0.0
        %1585 = vmatprep.subr.mxu0 0.0
        %1586 = vmatpush1.msra.mxu0 0.0
        %1587 = vmatprep.subr.mxu0 0.0
        %1588 = vmatpush1.msra.mxu0 0.0
        %1589 = vmatprep.subr.mxu0 0.0
        %1590 = vmatpush1.msra.mxu0 0.0
        %1591 = vmatprep.subr.mxu0 0.0
        %1592 = vmatpush1.msra.mxu0 0.0
        %1593 = vmatprep.subr.mxu0 0.0
        %1594 = vmatpush1.msra.mxu0 0.0
        %1595 = vmatprep.subr.mxu0 0.0
        %1596 = vmatpush1.msra.mxu0 0.0
        %1597 = vmatprep.subr.mxu0 0.0
        %1598 = vmatpush1.msra.mxu0 0.0
        %1599 = vmatprep.subr.mxu0 0.0
        %1600 = vmatpush1.msra.mxu0 0.0
        %1601 = vmatprep.subr.mxu0 0.0
        %1602 = vmatpush1.msra.mxu0 0.0
        %1603 = vmatprep.subr.mxu0 0.0
        %1604 = vmatpush1.msra.mxu0 0.0
        %1605 = vmatprep.subr.mxu0 0.0
        %1606 = vmatpush1.msra.mxu0 0.0
        %1607 = vmatprep.subr.mxu0 0.0
        %1608 = vmatpush1.msra.mxu0 0.0
        %1609 = vmatprep.subr.mxu0 0.0
        %1610 = vmatpush1.msra.mxu0 0.0
        %1611 = vmatprep.subr.mxu0 0.0
        %1612 = vmatpush1.msra.mxu0 0.0
        %1613 = vmatprep.subr.mxu0 0.0
        %1614 = vmatpush1.msra.mxu0 0.0
        %1615 = vmatprep.subr.mxu0 0.0
        %1616 = vmatpush1.msra.mxu0 0.0
        %1617 = vmatprep.subr.mxu0 0.0
        %1618 = vmatpush1.msra.mxu0 0.0
        %1619 = vmatprep.subr.mxu0 0.0
        %1620 = vmatpush1.msra.mxu0 0.0
        %1621 = vmatprep.mubr.f32.mxu0 0.0
        %1622 = vmatmul.mubr.f32.gmra.mrb[0].mxu0 %v866
        %v1623 = vpop.f32.mrb[0].mxu0
        %v1624 = vadd.f32 %v854, %v1623
        %v1625 = vpop.f32.mrb[0].mxu0
        %1626 = vmatprep.mubr.f32.mxu0 0.0
        %1627 = vmatmul.mubr.f32.gmra.mrb[0].mxu0 %v869
        %v1628 = vpop.f32.mrb[0].mxu0
        %v1629 = vadd.f32 %v854, %v1628
        %v1630 = vpop.f32.mrb[0].mxu0
        %1631 = vmatprep.mubr.f32.mxu0 0.0
        %1632 = vmatmul.mubr.f32.gmra.mrb[0].mxu0 %v872
        %v1633 = vpop.f32.mrb[0].mxu0
        %v1634 = vadd.f32 %v854, %v1633
        %v1635 = vpop.f32.mrb[0].mxu0
        %1636 = vmatprep.mubr.f32.mxu0 0.0
        %1637 = vmatmul.mubr.f32.gmra.mrb[0].mxu0 %v875
        %v1638 = vpop.f32.mrb[0].mxu0
        %v1639 = vadd.f32 %v854, %v1638
        %v1640 = vpop.f32.mrb[0].mxu0
        %1641 = vmatprep.mubr.f32.mxu0 0.0
        %1642 = vmatmul.mubr.f32.gmra.mrb[0].mxu0 %v878
        %v1643 = vpop.f32.mrb[0].mxu0
        %v1644 = vadd.f32 %v854, %v1643
        %v1645 = vpop.f32.mrb[0].mxu0
        %1646 = vmatprep.mubr.f32.mxu0 0.0
        %1647 = vmatmul.mubr.f32.gmra.mrb[0].mxu0 %v881
        %v1648 = vpop.f32.mrb[0].mxu0
        %v1649 = vadd.f32 %v854, %v1648
        %v1650 = vpop.f32.mrb[0].mxu0
        %1651 = vmatprep.mubr.f32.mxu0 0.0
        %1652 = vmatmul.mubr.f32.gmra.mrb[0].mxu0 %v884
        %v1653 = vpop.f32.mrb[0].mxu0
        %v1654 = vadd.f32 %v854, %v1653
        %v1655 = vpop.f32.mrb[0].mxu0
        %1656 = vmatprep.mubr.f32.mxu0 0.0
        %1657 = vmatmul.mubr.f32.gmra.mrb[0].mxu0 %v887
        %v1658 = vpop.f32.mrb[0].mxu0
        %v1659 = vadd.f32 %v854, %v1658
        %v1660 = vpop.f32.mrb[0].mxu0
        %1661 = vmatprep.mubr.f32.mxu0 0.0
        %1662 = vmatmul.mubr.f32.gmra.mrb[0].mxu0 %v890
        %v1663 = vpop.f32.mrb[0].mxu0
        %v1664 = vadd.f32 %v854, %v1663
        %v1665 = vpop.f32.mrb[0].mxu0
        %1666 = vmatprep.mubr.f32.mxu0 0.0
        %1667 = vmatmul.mubr.f32.gmra.mrb[0].mxu0 %v893
        %v1668 = vpop.f32.mrb[0].mxu0
        %v1669 = vadd.f32 %v854, %v1668
        %v1670 = vpop.f32.mrb[0].mxu0
        %1671 = vmatprep.mubr.f32.mxu0 0.0
        %1672 = vmatmul.mubr.f32.gmra.mrb[0].mxu0 %v896
        %v1673 = vpop.f32.mrb[0].mxu0
        %v1674 = vadd.f32 %v854, %v1673
        %v1675 = vpop.f32.mrb[0].mxu0
        %1676 = vmatprep.mubr.f32.mxu0 0.0
        %1677 = vmatmul.mubr.f32.gmra.mrb[0].mxu0 %v899
        %v1678 = vpop.f32.mrb[0].mxu0
        %v1679 = vadd.f32 %v854, %v1678
        %v1680 = vpop.f32.mrb[0].mxu0
        %1681 = vmatprep.mubr.f32.mxu0 0.0
        %1682 = vmatmul.mubr.f32.gmra.mrb[0].mxu0 %v902
        %v1683 = vpop.f32.mrb[0].mxu0
        %v1684 = vadd.f32 %v854, %v1683
        %v1685 = vpop.f32.mrb[0].mxu0
        %1686 = vmatprep.mubr.f32.mxu0 0.0
        %1687 = vmatmul.mubr.f32.gmra.mrb[0].mxu0 %v905
        %v1688 = vpop.f32.mrb[0].mxu0
        %v1689 = vadd.f32 %v854, %v1688
        %v1690 = vpop.f32.mrb[0].mxu0
        %1691 = vmatprep.mubr.f32.mxu0 0.0
        %1692 = vmatmul.mubr.f32.gmra.mrb[0].mxu0 %v908
        %v1693 = vpop.f32.mrb[0].mxu0
        %v1694 = vadd.f32 %v854, %v1693
        %v1695 = vpop.f32.mrb[0].mxu0
        %1696 = vmatprep.mubr.f32.mxu0 0.0
        %1697 = vmatmul.mubr.f32.gmra.mrb[0].mxu0 %v911
        %v1698 = vpop.f32.mrb[0].mxu0
        %v1699 = vadd.f32 %v854, %v1698
        %v1700 = vpop.f32.mrb[0].mxu0
        %1701 = vdwg.mxu0
        %v1702 = vld [vmem:[%s303] sm:$0xf]
        %v1703 = vld [vmem:[%s303 + $0x4] sm:$0xf]
        %v1704 = vld [vmem:[%s303 + $0xc] sm:$0xf]
        %v1705 = vld [vmem:[%s303 + $0x10] sm:$0xf]
        %v1706 = vld [vmem:[%s303 + $0x18] sm:$0xf]
        %v1707 = vld [vmem:[%s303 + $0x1c] sm:$0xf]
        %v1708 = vld [vmem:[%s303 + $0x24] sm:$0xf]
        %v1709 = vld [vmem:[%s303 + $0x28] sm:$0xf]
        %v1710 = vld [vmem:[%s303 + $0x30] sm:$0xf]
        %v1711 = vld [vmem:[%s303 + $0x34] sm:$0xf]
        %v1712 = vld [vmem:[%s303 + $0x3c] sm:$0xf]
        %v1713 = vld [vmem:[%s303 + $0x40] sm:$0xf]
        %v1714 = vld [vmem:[%s303 + $0x48] sm:$0xf]
        %v1715 = vld [vmem:[%s303 + $0x4c] sm:$0xf]
        %v1716 = vld [vmem:[%s303 + $0x54] sm:$0xf]
        %v1717 = vld [vmem:[%s303 + $0x58] sm:$0xf]
        %v1718 = vunpack.c.l.bf16 %v1702
        %v1719 = vunpack.c.l.bf16 %v1703
        %v1720 = vunpack.c.l.bf16 %v1704
        %v1721 = vunpack.c.l.bf16 %v1705
        %v1722 = vunpack.c.l.bf16 %v1706
        %v1723 = vunpack.c.l.bf16 %v1707
        %v1724 = vunpack.c.l.bf16 %v1708
        %v1725 = vunpack.c.l.bf16 %v1709
        %v1726 = vunpack.c.l.bf16 %v1710
        %v1727 = vunpack.c.l.bf16 %v1711
        %v1728 = vunpack.c.l.bf16 %v1712
        %v1729 = vunpack.c.l.bf16 %v1713
        %v1730 = vunpack.c.l.bf16 %v1714
        %v1731 = vunpack.c.l.bf16 %v1715
        %v1732 = vunpack.c.l.bf16 %v1716
        %v1733 = vunpack.c.l.bf16 %v1717
        %v1734 = vmul.f32 %v980, %v1718
        %v1735 = vmul.f32 %v986, %v1719
        %v1736 = vmul.f32 %v992, %v1720
        %v1737 = vmul.f32 %v998, %v1721
        %v1738 = vmul.f32 %v1004, %v1722
        %v1739 = vmul.f32 %v1010, %v1723
        %v1740 = vmul.f32 %v1016, %v1724
        %v1741 = vmul.f32 %v1022, %v1725
        %v1742 = vmul.f32 %v1028, %v1726
        %v1743 = vmul.f32 %v1034, %v1727
        %v1744 = vmul.f32 %v1040, %v1728
        %v1745 = vmul.f32 %v1046, %v1729
        %v1746 = vmul.f32 %v1052, %v1730
        %v1747 = vmul.f32 %v1058, %v1731
        %v1748 = vmul.f32 %v1064, %v1732
        %v1749 = vmul.f32 %v1070, %v1733
        %v1750 = vld [vmem:[%s303 + $0x8] sm:$0x1]
        %v1751 = vld [vmem:[%s303 + $0x14] sm:$0x1]
        %v1752 = vld [vmem:[%s303 + $0x20] sm:$0x1]
        %v1753 = vld [vmem:[%s303 + $0x2c] sm:$0x1]
        %v1754 = vld [vmem:[%s303 + $0x38] sm:$0x1]
        %v1755 = vld [vmem:[%s303 + $0x44] sm:$0x1]
        %v1756 = vld [vmem:[%s303 + $0x50] sm:$0x1]
        %v1757 = vld [vmem:[%s303 + $0x5c] sm:$0x1]
        %v1759 = vshrl.u32 %v1702, 16
        %v1761 = vrot.slane %v1759, 4
        %v1762 = vshll.u32 %v1702, 16
        %v1764 = vrot.slane %v1762, 5
        %v1765 = vor.u32 %v1761, %v1764
        %v1766 = vrot.slane %v1765, 4
        %v1768 = vshll.u32 %v1703, 16
        %v1770 = vrot.slane %v1768, 5
        %v1771 = vsel %vm331, %v1766, %v1770
        %v1772 = vshrl.u32 %v1703, 16
        %v1774 = vrot.slane %v1772, 4
        %v1775 = vor.u32 %v1774, %v1770
        %v1776 = vrot.slane %v1775, 4
        %v1778 = vshll.u32 %v1750, 16
        %v1780 = vrot.slane %v1778, 5
        %v1781 = vsel %vm331, %v1776, %v1780
        %v1783 = vshrl.u32 %v1704, 16
        %v1785 = vrot.slane %v1783, 4
        %v1786 = vshll.u32 %v1704, 16
        %v1788 = vrot.slane %v1786, 5
        %v1789 = vor.u32 %v1785, %v1788
        %v1790 = vrot.slane %v1789, 4
        %v1792 = vshll.u32 %v1705, 16
        %v1794 = vrot.slane %v1792, 5
        %v1795 = vsel %vm331, %v1790, %v1794
        %v1796 = vshrl.u32 %v1705, 16
        %v1798 = vrot.slane %v1796, 4
        %v1799 = vor.u32 %v1798, %v1794
        %v1800 = vrot.slane %v1799, 4
        %v1802 = vshll.u32 %v1751, 16
        %v1804 = vrot.slane %v1802, 5
        %v1805 = vsel %vm331, %v1800, %v1804
        %v1807 = vshrl.u32 %v1706, 16
        %v1809 = vrot.slane %v1807, 4
        %v1810 = vshll.u32 %v1706, 16
        %v1812 = vrot.slane %v1810, 5
        %v1813 = vor.u32 %v1809, %v1812
        %v1814 = vrot.slane %v1813, 4
        %v1816 = vshll.u32 %v1707, 16
        %v1818 = vrot.slane %v1816, 5
        %v1819 = vsel %vm331, %v1814, %v1818
        %v1820 = vshrl.u32 %v1707, 16
        %v1822 = vrot.slane %v1820, 4
        %v1823 = vor.u32 %v1822, %v1818
        %v1824 = vrot.slane %v1823, 4
        %v1826 = vshll.u32 %v1752, 16
        %v1828 = vrot.slane %v1826, 5
        %v1829 = vsel %vm331, %v1824, %v1828
        %v1831 = vshrl.u32 %v1708, 16
        %v1833 = vrot.slane %v1831, 4
        %v1834 = vshll.u32 %v1708, 16
        %v1836 = vrot.slane %v1834, 5
        %v1837 = vor.u32 %v1833, %v1836
        %v1838 = vrot.slane %v1837, 4
        %v1840 = vshll.u32 %v1709, 16
        %v1842 = vrot.slane %v1840, 5
        %v1843 = vsel %vm331, %v1838, %v1842
        %v1844 = vshrl.u32 %v1709, 16
        %v1846 = vrot.slane %v1844, 4
        %v1847 = vor.u32 %v1846, %v1842
        %v1848 = vrot.slane %v1847, 4
        %v1850 = vshll.u32 %v1753, 16
        %v1852 = vrot.slane %v1850, 5
        %v1853 = vsel %vm331, %v1848, %v1852
        %v1855 = vshrl.u32 %v1710, 16
        %v1857 = vrot.slane %v1855, 4
        %v1858 = vshll.u32 %v1710, 16
        %v1860 = vrot.slane %v1858, 5
        %v1861 = vor.u32 %v1857, %v1860
        %v1862 = vrot.slane %v1861, 4
        %v1864 = vshll.u32 %v1711, 16
        %v1866 = vrot.slane %v1864, 5
        %v1867 = vsel %vm331, %v1862, %v1866
        %v1868 = vshrl.u32 %v1711, 16
        %v1870 = vrot.slane %v1868, 4
        %v1871 = vor.u32 %v1870, %v1866
        %v1872 = vrot.slane %v1871, 4
        %v1874 = vshll.u32 %v1754, 16
        %v1876 = vrot.slane %v1874, 5
        %v1877 = vsel %vm331, %v1872, %v1876
        %v1879 = vshrl.u32 %v1712, 16
        %v1881 = vrot.slane %v1879, 4
        %v1882 = vshll.u32 %v1712, 16
        %v1884 = vrot.slane %v1882, 5
        %v1885 = vor.u32 %v1881, %v1884
        %v1886 = vrot.slane %v1885, 4
        %v1888 = vshll.u32 %v1713, 16
        %v1890 = vrot.slane %v1888, 5
        %v1891 = vsel %vm331, %v1886, %v1890
        %v1892 = vshrl.u32 %v1713, 16
        %v1894 = vrot.slane %v1892, 4
        %v1895 = vor.u32 %v1894, %v1890
        %v1896 = vrot.slane %v1895, 4
        %v1898 = vshll.u32 %v1755, 16
        %v1900 = vrot.slane %v1898, 5
        %v1901 = vsel %vm331, %v1896, %v1900
        %v1903 = vshrl.u32 %v1714, 16
        %v1905 = vrot.slane %v1903, 4
        %v1906 = vshll.u32 %v1714, 16
        %v1908 = vrot.slane %v1906, 5
        %v1909 = vor.u32 %v1905, %v1908
        %v1910 = vrot.slane %v1909, 4
        %v1912 = vshll.u32 %v1715, 16
        %v1914 = vrot.slane %v1912, 5
        %v1915 = vsel %vm331, %v1910, %v1914
        %v1916 = vshrl.u32 %v1715, 16
        %v1918 = vrot.slane %v1916, 4
        %v1919 = vor.u32 %v1918, %v1914
        %v1920 = vrot.slane %v1919, 4
        %v1922 = vshll.u32 %v1756, 16
        %v1924 = vrot.slane %v1922, 5
        %v1925 = vsel %vm331, %v1920, %v1924
        %v1927 = vshrl.u32 %v1716, 16
        %v1929 = vrot.slane %v1927, 4
        %v1930 = vshll.u32 %v1716, 16
        %v1932 = vrot.slane %v1930, 5
        %v1933 = vor.u32 %v1929, %v1932
        %v1934 = vrot.slane %v1933, 4
        %v1936 = vshll.u32 %v1717, 16
        %v1938 = vrot.slane %v1936, 5
        %v1939 = vsel %vm331, %v1934, %v1938
        %v1940 = vshrl.u32 %v1717, 16
        %v1942 = vrot.slane %v1940, 4
        %v1943 = vor.u32 %v1942, %v1938
        %v1944 = vrot.slane %v1943, 4
        %v1946 = vshll.u32 %v1757, 16
        %v1948 = vrot.slane %v1946, 5
        %v1949 = vsel %vm331, %v1944, %v1948
        %v1966 = vunpack.c.l.bf16 %v1771
        %v1967 = vunpack.c.l.bf16 %v1781
        %v1968 = vunpack.c.l.bf16 %v1795
        %v1969 = vunpack.c.l.bf16 %v1805
        %v1970 = vunpack.c.l.bf16 %v1819
        %v1971 = vunpack.c.l.bf16 %v1829
        %v1972 = vunpack.c.l.bf16 %v1843
        %v1973 = vunpack.c.l.bf16 %v1853
        %v1974 = vunpack.c.l.bf16 %v1867
        %v1975 = vunpack.c.l.bf16 %v1877
        %v1976 = vunpack.c.l.bf16 %v1891
        %v1977 = vunpack.c.l.bf16 %v1901
        %v1978 = vunpack.c.l.bf16 %v1915
        %v1979 = vunpack.c.l.bf16 %v1925
        %v1980 = vunpack.c.l.bf16 %v1939
        %v1981 = vunpack.c.l.bf16 %v1949
        %v1982 = vmul.f32 %v982, %v1966
        %v1983 = vmul.f32 %v988, %v1967
        %v1984 = vmul.f32 %v994, %v1968
        %v1985 = vmul.f32 %v1000, %v1969
        %v1986 = vmul.f32 %v1006, %v1970
        %v1987 = vmul.f32 %v1012, %v1971
        %v1988 = vmul.f32 %v1018, %v1972
        %v1989 = vmul.f32 %v1024, %v1973
        %v1990 = vmul.f32 %v1030, %v1974
        %v1991 = vmul.f32 %v1036, %v1975
        %v1992 = vmul.f32 %v1042, %v1976
        %v1993 = vmul.f32 %v1048, %v1977
        %v1994 = vmul.f32 %v1054, %v1978
        %v1995 = vmul.f32 %v1060, %v1979
        %v1996 = vmul.f32 %v1066, %v1980
        %v1997 = vmul.f32 %v1072, %v1981
        %v1998 = vadd.f32 %v1734, %v1982
        %v1999 = vadd.f32 %v1735, %v1983
        %v2000 = vadd.f32 %v1736, %v1984
        %v2001 = vadd.f32 %v1737, %v1985
        %v2002 = vadd.f32 %v1738, %v1986
        %v2003 = vadd.f32 %v1739, %v1987
        %v2004 = vadd.f32 %v1740, %v1988
        %v2005 = vadd.f32 %v1741, %v1989
        %v2006 = vadd.f32 %v1742, %v1990
        %v2007 = vadd.f32 %v1743, %v1991
        %v2008 = vadd.f32 %v1744, %v1992
        %v2009 = vadd.f32 %v1745, %v1993
        %v2010 = vadd.f32 %v1746, %v1994
        %v2011 = vadd.f32 %v1747, %v1995
        %v2012 = vadd.f32 %v1748, %v1996
        %v2013 = vadd.f32 %v1749, %v1997
        %v2014 = vld [vmem:[%s303] sm:$0xe]
        %v2015 = vld [vmem:[%s303 + $0xc] sm:$0xe]
        %v2016 = vld [vmem:[%s303 + $0x18] sm:$0xe]
        %v2017 = vld [vmem:[%s303 + $0x24] sm:$0xe]
        %v2018 = vld [vmem:[%s303 + $0x30] sm:$0xe]
        %v2019 = vld [vmem:[%s303 + $0x3c] sm:$0xe]
        %v2020 = vld [vmem:[%s303 + $0x48] sm:$0xe]
        %v2021 = vld [vmem:[%s303 + $0x54] sm:$0xe]
        %vm2046 = vcmask 1042432
        %vm2047 = vcmask 1046532
        %vm2048 = vmor %vm2046, %vm2047
        %v2049 = vrot.slane %v2014, 5
        %v2050 = vrot.slane %v2049, 4
        %v2051 = vrot.slane %v1703, 5
        %v2052 = vsel %vm2048, %v2050, %v2051
        %v2053 = vrot.slane %v2051, 4
        %v2054 = vrot.slane %v1750, 5
        %v2055 = vsel %vm2048, %v2053, %v2054
        %v2056 = vrot.slane %v2015, 5
        %v2057 = vrot.slane %v2056, 4
        %v2058 = vrot.slane %v1705, 5
        %v2059 = vsel %vm2048, %v2057, %v2058
        %v2060 = vrot.slane %v2058, 4
        %v2061 = vrot.slane %v1751, 5
        %v2062 = vsel %vm2048, %v2060, %v2061
        %v2063 = vrot.slane %v2016, 5
        %v2064 = vrot.slane %v2063, 4
        %v2065 = vrot.slane %v1707, 5
        %v2066 = vsel %vm2048, %v2064, %v2065
        %v2067 = vrot.slane %v2065, 4
        %v2068 = vrot.slane %v1752, 5
        %v2069 = vsel %vm2048, %v2067, %v2068
        %v2070 = vrot.slane %v2017, 5
        %v2071 = vrot.slane %v2070, 4
        %v2072 = vrot.slane %v1709, 5
        %v2073 = vsel %vm2048, %v2071, %v2072
        %v2074 = vrot.slane %v2072, 4
        %v2075 = vrot.slane %v1753, 5
        %v2076 = vsel %vm2048, %v2074, %v2075
        %v2077 = vrot.slane %v2018, 5
        %v2078 = vrot.slane %v2077, 4
        %v2079 = vrot.slane %v1711, 5
        %v2080 = vsel %vm2048, %v2078, %v2079
        %v2081 = vrot.slane %v2079, 4
        %v2082 = vrot.slane %v1754, 5
        %v2083 = vsel %vm2048, %v2081, %v2082
        %v2084 = vrot.slane %v2019, 5
        %v2085 = vrot.slane %v2084, 4
        %v2086 = vrot.slane %v1713, 5
        %v2087 = vsel %vm2048, %v2085, %v2086
        %v2088 = vrot.slane %v2086, 4
        %v2089 = vrot.slane %v1755, 5
        %v2090 = vsel %vm2048, %v2088, %v2089
        %v2091 = vrot.slane %v2020, 5
        %v2092 = vrot.slane %v2091, 4
        %v2093 = vrot.slane %v1715, 5
        %v2094 = vsel %vm2048, %v2092, %v2093
        %v2095 = vrot.slane %v2093, 4
        %v2096 = vrot.slane %v1756, 5
        %v2097 = vsel %vm2048, %v2095, %v2096
        %v2098 = vrot.slane %v2021, 5
        %v2099 = vrot.slane %v2098, 4
        %v2100 = vrot.slane %v1717, 5
        %v2101 = vsel %vm2048, %v2099, %v2100
        %v2102 = vrot.slane %v2100, 4
        %v2103 = vrot.slane %v1757, 5
        %v2104 = vsel %vm2048, %v2102, %v2103
        %v2121 = vunpack.c.l.bf16 %v2052
        %v2122 = vunpack.c.l.bf16 %v2055
        %v2123 = vunpack.c.l.bf16 %v2059
        %v2124 = vunpack.c.l.bf16 %v2062
        %v2125 = vunpack.c.l.bf16 %v2066
        %v2126 = vunpack.c.l.bf16 %v2069
        %v2127 = vunpack.c.l.bf16 %v2073
        %v2128 = vunpack.c.l.bf16 %v2076
        %v2129 = vunpack.c.l.bf16 %v2080
        %v2130 = vunpack.c.l.bf16 %v2083
        %v2131 = vunpack.c.l.bf16 %v2087
        %v2132 = vunpack.c.l.bf16 %v2090
        %v2133 = vunpack.c.l.bf16 %v2094
        %v2134 = vunpack.c.l.bf16 %v2097
        %v2135 = vunpack.c.l.bf16 %v2101
        %v2136 = vunpack.c.l.bf16 %v2104
        %v2137 = vmul.f32 %v1141, %v2121
        %v2138 = vmul.f32 %v1147, %v2122
        %v2139 = vmul.f32 %v1153, %v2123
        %v2140 = vmul.f32 %v1159, %v2124
        %v2141 = vmul.f32 %v1165, %v2125
        %v2142 = vmul.f32 %v1171, %v2126
        %v2143 = vmul.f32 %v1177, %v2127
        %v2144 = vmul.f32 %v1183, %v2128
        %v2145 = vmul.f32 %v1189, %v2129
        %v2146 = vmul.f32 %v1195, %v2130
        %v2147 = vmul.f32 %v1201, %v2131
        %v2148 = vmul.f32 %v1207, %v2132
        %v2149 = vmul.f32 %v1213, %v2133
        %v2150 = vmul.f32 %v1219, %v2134
        %v2151 = vmul.f32 %v1225, %v2135
        %v2152 = vmul.f32 %v1231, %v2136
        %v2153 = vadd.f32 %v1998, %v2137
        %v2154 = vadd.f32 %v1999, %v2138
        %v2155 = vadd.f32 %v2000, %v2139
        %v2156 = vadd.f32 %v2001, %v2140
        %v2157 = vadd.f32 %v2002, %v2141
        %v2158 = vadd.f32 %v2003, %v2142
        %v2159 = vadd.f32 %v2004, %v2143
        %v2160 = vadd.f32 %v2005, %v2144
        %v2161 = vadd.f32 %v2006, %v2145
        %v2162 = vadd.f32 %v2007, %v2146
        %v2163 = vadd.f32 %v2008, %v2147
        %v2164 = vadd.f32 %v2009, %v2148
        %v2165 = vadd.f32 %v2010, %v2149
        %v2166 = vadd.f32 %v2011, %v2150
        %v2167 = vadd.f32 %v2012, %v2151
        %v2168 = vadd.f32 %v2013, %v2152
        %v2169 = vld [vmem:[%s304] sm:$0xf]
        %v2170 = vld [vmem:[%s304 + $0x4] sm:$0xf]
        %v2171 = vld [vmem:[%s304 + $0xc] sm:$0xf]
        %v2172 = vld [vmem:[%s304 + $0x10] sm:$0xf]
        %v2173 = vld [vmem:[%s304 + $0x18] sm:$0xf]
        %v2174 = vld [vmem:[%s304 + $0x1c] sm:$0xf]
        %v2175 = vld [vmem:[%s304 + $0x24] sm:$0xf]
        %v2176 = vld [vmem:[%s304 + $0x28] sm:$0xf]
        %v2177 = vld [vmem:[%s304 + $0x30] sm:$0xf]
        %v2178 = vld [vmem:[%s304 + $0x34] sm:$0xf]
        %v2179 = vld [vmem:[%s304 + $0x3c] sm:$0xf]
        %v2180 = vld [vmem:[%s304 + $0x40] sm:$0xf]
        %v2181 = vld [vmem:[%s304 + $0x48] sm:$0xf]
        %v2182 = vld [vmem:[%s304 + $0x4c] sm:$0xf]
        %v2183 = vld [vmem:[%s304 + $0x54] sm:$0xf]
        %v2184 = vld [vmem:[%s304 + $0x58] sm:$0xf]
        %v2185 = vunpack.c.l.bf16 %v2169
        %v2186 = vunpack.c.l.bf16 %v2170
        %v2187 = vunpack.c.l.bf16 %v2171
        %v2188 = vunpack.c.l.bf16 %v2172
        %v2189 = vunpack.c.l.bf16 %v2173
        %v2190 = vunpack.c.l.bf16 %v2174
        %v2191 = vunpack.c.l.bf16 %v2175
        %v2192 = vunpack.c.l.bf16 %v2176
        %v2193 = vunpack.c.l.bf16 %v2177
        %v2194 = vunpack.c.l.bf16 %v2178
        %v2195 = vunpack.c.l.bf16 %v2179
        %v2196 = vunpack.c.l.bf16 %v2180
        %v2197 = vunpack.c.l.bf16 %v2181
        %v2198 = vunpack.c.l.bf16 %v2182
        %v2199 = vunpack.c.l.bf16 %v2183
        %v2200 = vunpack.c.l.bf16 %v2184
        %v2201 = vmul.f32 %v1143, %v2185
        %v2202 = vmul.f32 %v1149, %v2186
        %v2203 = vmul.f32 %v1155, %v2187
        %v2204 = vmul.f32 %v1161, %v2188
        %v2205 = vmul.f32 %v1167, %v2189
        %v2206 = vmul.f32 %v1173, %v2190
        %v2207 = vmul.f32 %v1179, %v2191
        %v2208 = vmul.f32 %v1185, %v2192
        %v2209 = vmul.f32 %v1191, %v2193
        %v2210 = vmul.f32 %v1197, %v2194
        %v2211 = vmul.f32 %v1203, %v2195
        %v2212 = vmul.f32 %v1209, %v2196
        %v2213 = vmul.f32 %v1215, %v2197
        %v2214 = vmul.f32 %v1221, %v2198
        %v2215 = vmul.f32 %v1227, %v2199
        %v2216 = vmul.f32 %v1233, %v2200
        %v2217 = vadd.f32 %v2153, %v2201
        %v2218 = vadd.f32 %v2154, %v2202
        %v2219 = vadd.f32 %v2155, %v2203
        %v2220 = vadd.f32 %v2156, %v2204
        %v2221 = vadd.f32 %v2157, %v2205
        %v2222 = vadd.f32 %v2158, %v2206
        %v2223 = vadd.f32 %v2159, %v2207
        %v2224 = vadd.f32 %v2160, %v2208
        %v2225 = vadd.f32 %v2161, %v2209
        %v2226 = vadd.f32 %v2162, %v2210
        %v2227 = vadd.f32 %v2163, %v2211
        %v2228 = vadd.f32 %v2164, %v2212
        %v2229 = vadd.f32 %v2165, %v2213
        %v2230 = vadd.f32 %v2166, %v2214
        %v2231 = vadd.f32 %v2167, %v2215
        %v2232 = vadd.f32 %v2168, %v2216
        %v2233 = vmul.f32 %v1302, %v540
        %v2234 = vmul.f32 %v1308, %v541
        %v2235 = vmul.f32 %v1314, %v542
        %v2236 = vmul.f32 %v1320, %v543
        %v2237 = vmul.f32 %v1326, %v544
        %v2238 = vmul.f32 %v1332, %v545
        %v2239 = vmul.f32 %v1338, %v546
        %v2240 = vmul.f32 %v1344, %v547
        %v2241 = vmul.f32 %v1350, %v548
        %v2242 = vmul.f32 %v1356, %v549
        %v2243 = vmul.f32 %v1362, %v550
        %v2244 = vmul.f32 %v1368, %v551
        %v2245 = vmul.f32 %v1374, %v552
        %v2246 = vmul.f32 %v1380, %v553
        %v2247 = vmul.f32 %v1386, %v554
        %v2248 = vmul.f32 %v1392, %v555
        %v2249 = vadd.f32 %v2217, %v2233
        %v2250 = vadd.f32 %v2218, %v2234
        %v2251 = vadd.f32 %v2219, %v2235
        %v2252 = vadd.f32 %v2220, %v2236
        %v2253 = vadd.f32 %v2221, %v2237
        %v2254 = vadd.f32 %v2222, %v2238
        %v2255 = vadd.f32 %v2223, %v2239
        %v2256 = vadd.f32 %v2224, %v2240
        %v2257 = vadd.f32 %v2225, %v2241
        %v2258 = vadd.f32 %v2226, %v2242
        %v2259 = vadd.f32 %v2227, %v2243
        %v2260 = vadd.f32 %v2228, %v2244
        %v2261 = vadd.f32 %v2229, %v2245
        %v2262 = vadd.f32 %v2230, %v2246
        %v2263 = vadd.f32 %v2231, %v2247
        %v2264 = vadd.f32 %v2232, %v2248
        %v2265 = vld [vmem:[%s304] sm:$0xe]
        %v2266 = vld [vmem:[%s304 + $0xc] sm:$0xe]
        %v2267 = vld [vmem:[%s304 + $0x18] sm:$0xe]
        %v2268 = vld [vmem:[%s304 + $0x24] sm:$0xe]
        %v2269 = vld [vmem:[%s304 + $0x30] sm:$0xe]
        %v2270 = vld [vmem:[%s304 + $0x3c] sm:$0xe]
        %v2271 = vld [vmem:[%s304 + $0x48] sm:$0xe]
        %v2272 = vld [vmem:[%s304 + $0x54] sm:$0xe]
        %v2297 = vrot.slane %v2265, 5
        %v2298 = vrot.slane %v2297, 4
        %v2299 = vrot.slane %v306, 5
        %v2300 = vsel %vm2048, %v2298, %v2299
        %v2301 = vrot.slane %v2299, 4
        %v2302 = vrot.slane %v307, 5
        %v2303 = vsel %vm2048, %v2301, %v2302
        %v2304 = vrot.slane %v2266, 5
        %v2305 = vrot.slane %v2304, 4
        %v2306 = vrot.slane %v309, 5
        %v2307 = vsel %vm2048, %v2305, %v2306
        %v2308 = vrot.slane %v2306, 4
        %v2309 = vrot.slane %v310, 5
        %v2310 = vsel %vm2048, %v2308, %v2309
        %v2311 = vrot.slane %v2267, 5
        %v2312 = vrot.slane %v2311, 4
        %v2313 = vrot.slane %v312, 5
        %v2314 = vsel %vm2048, %v2312, %v2313
        %v2315 = vrot.slane %v2313, 4
        %v2316 = vrot.slane %v313, 5
        %v2317 = vsel %vm2048, %v2315, %v2316
        %v2318 = vrot.slane %v2268, 5
        %v2319 = vrot.slane %v2318, 4
        %v2320 = vrot.slane %v315, 5
        %v2321 = vsel %vm2048, %v2319, %v2320
        %v2322 = vrot.slane %v2320, 4
        %v2323 = vrot.slane %v316, 5
        %v2324 = vsel %vm2048, %v2322, %v2323
        %v2325 = vrot.slane %v2269, 5
        %v2326 = vrot.slane %v2325, 4
        %v2327 = vrot.slane %v318, 5
        %v2328 = vsel %vm2048, %v2326, %v2327
        %v2329 = vrot.slane %v2327, 4
        %v2330 = vrot.slane %v319, 5
        %v2331 = vsel %vm2048, %v2329, %v2330
        %v2332 = vrot.slane %v2270, 5
        %v2333 = vrot.slane %v2332, 4
        %v2334 = vrot.slane %v321, 5
        %v2335 = vsel %vm2048, %v2333, %v2334
        %v2336 = vrot.slane %v2334, 4
        %v2337 = vrot.slane %v322, 5
        %v2338 = vsel %vm2048, %v2336, %v2337
        %v2339 = vrot.slane %v2271, 5
        %v2340 = vrot.slane %v2339, 4
        %v2341 = vrot.slane %v324, 5
        %v2342 = vsel %vm2048, %v2340, %v2341
        %v2343 = vrot.slane %v2341, 4
        %v2344 = vrot.slane %v325, 5
        %v2345 = vsel %vm2048, %v2343, %v2344
        %v2346 = vrot.slane %v2272, 5
        %v2347 = vrot.slane %v2346, 4
        %v2348 = vrot.slane %v327, 5
        %v2349 = vsel %vm2048, %v2347, %v2348
        %v2350 = vrot.slane %v2348, 4
        %v2351 = vrot.slane %v328, 5
        %v2352 = vsel %vm2048, %v2350, %v2351
        %v2369 = vunpack.c.l.bf16 %v2300
        %v2370 = vunpack.c.l.bf16 %v2303
        %v2371 = vunpack.c.l.bf16 %v2307
        %v2372 = vunpack.c.l.bf16 %v2310
        %v2373 = vunpack.c.l.bf16 %v2314
        %v2374 = vunpack.c.l.bf16 %v2317
        %v2375 = vunpack.c.l.bf16 %v2321
        %v2376 = vunpack.c.l.bf16 %v2324
        %v2377 = vunpack.c.l.bf16 %v2328
        %v2378 = vunpack.c.l.bf16 %v2331
        %v2379 = vunpack.c.l.bf16 %v2335
        %v2380 = vunpack.c.l.bf16 %v2338
        %v2381 = vunpack.c.l.bf16 %v2342
        %v2382 = vunpack.c.l.bf16 %v2345
        %v2383 = vunpack.c.l.bf16 %v2349
        %v2384 = vunpack.c.l.bf16 %v2352
        %v2385 = vmul.f32 %v1304, %v2369
        %v2386 = vmul.f32 %v1310, %v2370
        %v2387 = vmul.f32 %v1316, %v2371
        %v2388 = vmul.f32 %v1322, %v2372
        %v2389 = vmul.f32 %v1328, %v2373
        %v2390 = vmul.f32 %v1334, %v2374
        %v2391 = vmul.f32 %v1340, %v2375
        %v2392 = vmul.f32 %v1346, %v2376
        %v2393 = vmul.f32 %v1352, %v2377
        %v2394 = vmul.f32 %v1358, %v2378
        %v2395 = vmul.f32 %v1364, %v2379
        %v2396 = vmul.f32 %v1370, %v2380
        %v2397 = vmul.f32 %v1376, %v2381
        %v2398 = vmul.f32 %v1382, %v2382
        %v2399 = vmul.f32 %v1388, %v2383
        %v2400 = vmul.f32 %v1394, %v2384
        %v2401 = vadd.f32 %v2249, %v2385
        %v2402 = vadd.f32 %v2250, %v2386
        %v2403 = vadd.f32 %v2251, %v2387
        %v2404 = vadd.f32 %v2252, %v2388
        %v2405 = vadd.f32 %v2253, %v2389
        %v2406 = vadd.f32 %v2254, %v2390
        %v2407 = vadd.f32 %v2255, %v2391
        %v2408 = vadd.f32 %v2256, %v2392
        %v2409 = vadd.f32 %v2257, %v2393
        %v2410 = vadd.f32 %v2258, %v2394
        %v2411 = vadd.f32 %v2259, %v2395
        %v2412 = vadd.f32 %v2260, %v2396
        %v2413 = vadd.f32 %v2261, %v2397
        %v2414 = vadd.f32 %v2262, %v2398
        %v2415 = vadd.f32 %v2263, %v2399
        %v2416 = vadd.f32 %v2264, %v2400
        %s2417 = scalar_lea.vmem %s303, 24
        %v2418 = vld [vmem:[%s2417] sm:$0xf]
        %v2419 = vld [vmem:[%s2417 + $0x4] sm:$0xf]
        %v2420 = vld [vmem:[%s2417 + $0xc] sm:$0xf]
        %v2421 = vld [vmem:[%s2417 + $0x10] sm:$0xf]
        %v2422 = vld [vmem:[%s2417 + $0x18] sm:$0xf]
        %v2423 = vld [vmem:[%s2417 + $0x1c] sm:$0xf]
        %v2424 = vld [vmem:[%s2417 + $0x24] sm:$0xf]
        %v2425 = vld [vmem:[%s2417 + $0x28] sm:$0xf]
        %v2426 = vld [vmem:[%s2417 + $0x30] sm:$0xf]
        %v2427 = vld [vmem:[%s2417 + $0x34] sm:$0xf]
        %v2428 = vld [vmem:[%s2417 + $0x3c] sm:$0xf]
        %v2429 = vld [vmem:[%s2417 + $0x40] sm:$0xf]
        %v2430 = vld [vmem:[%s2417 + $0x48] sm:$0xf]
        %v2431 = vld [vmem:[%s2417 + $0x4c] sm:$0xf]
        %v2432 = vld [vmem:[%s2417 + $0x54] sm:$0xf]
        %v2433 = vld [vmem:[%s2417 + $0x58] sm:$0xf]
        %v2434 = vunpack.c.l.bf16 %v2418
        %v2435 = vunpack.c.l.bf16 %v2419
        %v2436 = vunpack.c.l.bf16 %v2420
        %v2437 = vunpack.c.l.bf16 %v2421
        %v2438 = vunpack.c.l.bf16 %v2422
        %v2439 = vunpack.c.l.bf16 %v2423
        %v2440 = vunpack.c.l.bf16 %v2424
        %v2441 = vunpack.c.l.bf16 %v2425
        %v2442 = vunpack.c.l.bf16 %v2426
        %v2443 = vunpack.c.l.bf16 %v2427
        %v2444 = vunpack.c.l.bf16 %v2428
        %v2445 = vunpack.c.l.bf16 %v2429
        %v2446 = vunpack.c.l.bf16 %v2430
        %v2447 = vunpack.c.l.bf16 %v2431
        %v2448 = vunpack.c.l.bf16 %v2432
        %v2449 = vunpack.c.l.bf16 %v2433
        %v2450 = vmul.f32 %v1463, %v2434
        %v2451 = vmul.f32 %v1469, %v2435
        %v2452 = vmul.f32 %v1475, %v2436
        %v2453 = vmul.f32 %v1481, %v2437
        %v2454 = vmul.f32 %v1487, %v2438
        %v2455 = vmul.f32 %v1493, %v2439
        %v2456 = vmul.f32 %v1499, %v2440
        %v2457 = vmul.f32 %v1505, %v2441
        %v2458 = vmul.f32 %v1511, %v2442
        %v2459 = vmul.f32 %v1517, %v2443
        %v2460 = vmul.f32 %v1523, %v2444
        %v2461 = vmul.f32 %v1529, %v2445
        %v2462 = vmul.f32 %v1535, %v2446
        %v2463 = vmul.f32 %v1541, %v2447
        %v2464 = vmul.f32 %v1547, %v2448
        %v2465 = vmul.f32 %v1553, %v2449
        %v2466 = vadd.f32 %v2401, %v2450
        %v2467 = vadd.f32 %v2402, %v2451
        %v2468 = vadd.f32 %v2403, %v2452
        %v2469 = vadd.f32 %v2404, %v2453
        %v2470 = vadd.f32 %v2405, %v2454
        %v2471 = vadd.f32 %v2406, %v2455
        %v2472 = vadd.f32 %v2407, %v2456
        %v2473 = vadd.f32 %v2408, %v2457
        %v2474 = vadd.f32 %v2409, %v2458
        %v2475 = vadd.f32 %v2410, %v2459
        %v2476 = vadd.f32 %v2411, %v2460
        %v2477 = vadd.f32 %v2412, %v2461
        %v2478 = vadd.f32 %v2413, %v2462
        %v2479 = vadd.f32 %v2414, %v2463
        %v2480 = vadd.f32 %v2415, %v2464
        %v2481 = vadd.f32 %v2416, %v2465
        %v2482 = vld [vmem:[%s2417 + $0x8] sm:$0x1]
        %v2483 = vld [vmem:[%s2417 + $0x14] sm:$0x1]
        %v2484 = vld [vmem:[%s2417 + $0x20] sm:$0x1]
        %v2485 = vld [vmem:[%s2417 + $0x2c] sm:$0x1]
        %v2486 = vld [vmem:[%s2417 + $0x38] sm:$0x1]
        %v2487 = vld [vmem:[%s2417 + $0x44] sm:$0x1]
        %v2488 = vld [vmem:[%s2417 + $0x50] sm:$0x1]
        %v2489 = vld [vmem:[%s2417 + $0x5c] sm:$0x1]
        %v2491 = vshrl.u32 %v2418, 16
        %v2493 = vrot.slane %v2491, 4
        %v2494 = vshll.u32 %v2418, 16
        %v2496 = vrot.slane %v2494, 5
        %v2497 = vor.u32 %v2493, %v2496
        %v2498 = vrot.slane %v2497, 4
        %v2500 = vshll.u32 %v2419, 16
        %v2502 = vrot.slane %v2500, 5
        %v2503 = vsel %vm331, %v2498, %v2502
        %v2504 = vshrl.u32 %v2419, 16
        %v2506 = vrot.slane %v2504, 4
        %v2507 = vor.u32 %v2506, %v2502
        %v2508 = vrot.slane %v2507, 4
        %v2510 = vshll.u32 %v2482, 16
        %v2512 = vrot.slane %v2510, 5
        %v2513 = vsel %vm331, %v2508, %v2512
        %v2515 = vshrl.u32 %v2420, 16
        %v2517 = vrot.slane %v2515, 4
        %v2518 = vshll.u32 %v2420, 16
        %v2520 = vrot.slane %v2518, 5
        %v2521 = vor.u32 %v2517, %v2520
        %v2522 = vrot.slane %v2521, 4
        %v2524 = vshll.u32 %v2421, 16
        %v2526 = vrot.slane %v2524, 5
        %v2527 = vsel %vm331, %v2522, %v2526
        %v2528 = vshrl.u32 %v2421, 16
        %v2530 = vrot.slane %v2528, 4
        %v2531 = vor.u32 %v2530, %v2526
        %v2532 = vrot.slane %v2531, 4
        %v2534 = vshll.u32 %v2483, 16
        %v2536 = vrot.slane %v2534, 5
        %v2537 = vsel %vm331, %v2532, %v2536
        %v2539 = vshrl.u32 %v2422, 16
        %v2541 = vrot.slane %v2539, 4
        %v2542 = vshll.u32 %v2422, 16
        %v2544 = vrot.slane %v2542, 5
        %v2545 = vor.u32 %v2541, %v2544
        %v2546 = vrot.slane %v2545, 4
        %v2548 = vshll.u32 %v2423, 16
        %v2550 = vrot.slane %v2548, 5
        %v2551 = vsel %vm331, %v2546, %v2550
        %v2552 = vshrl.u32 %v2423, 16
        %v2554 = vrot.slane %v2552, 4
        %v2555 = vor.u32 %v2554, %v2550
        %v2556 = vrot.slane %v2555, 4
        %v2558 = vshll.u32 %v2484, 16
        %v2560 = vrot.slane %v2558, 5
        %v2561 = vsel %vm331, %v2556, %v2560
        %v2563 = vshrl.u32 %v2424, 16
        %v2565 = vrot.slane %v2563, 4
        %v2566 = vshll.u32 %v2424, 16
        %v2568 = vrot.slane %v2566, 5
        %v2569 = vor.u32 %v2565, %v2568
        %v2570 = vrot.slane %v2569, 4
        %v2572 = vshll.u32 %v2425, 16
        %v2574 = vrot.slane %v2572, 5
        %v2575 = vsel %vm331, %v2570, %v2574
        %v2576 = vshrl.u32 %v2425, 16
        %v2578 = vrot.slane %v2576, 4
        %v2579 = vor.u32 %v2578, %v2574
        %v2580 = vrot.slane %v2579, 4
        %v2582 = vshll.u32 %v2485, 16
        %v2584 = vrot.slane %v2582, 5
        %v2585 = vsel %vm331, %v2580, %v2584
        %v2587 = vshrl.u32 %v2426, 16
        %v2589 = vrot.slane %v2587, 4
        %v2590 = vshll.u32 %v2426, 16
        %v2592 = vrot.slane %v2590, 5
        %v2593 = vor.u32 %v2589, %v2592
        %v2594 = vrot.slane %v2593, 4
        %v2596 = vshll.u32 %v2427, 16
        %v2598 = vrot.slane %v2596, 5
        %v2599 = vsel %vm331, %v2594, %v2598
        %v2600 = vshrl.u32 %v2427, 16
        %v2602 = vrot.slane %v2600, 4
        %v2603 = vor.u32 %v2602, %v2598
        %v2604 = vrot.slane %v2603, 4
        %v2606 = vshll.u32 %v2486, 16
        %v2608 = vrot.slane %v2606, 5
        %v2609 = vsel %vm331, %v2604, %v2608
        %v2611 = vshrl.u32 %v2428, 16
        %v2613 = vrot.slane %v2611, 4
        %v2614 = vshll.u32 %v2428, 16
        %v2616 = vrot.slane %v2614, 5
        %v2617 = vor.u32 %v2613, %v2616
        %v2618 = vrot.slane %v2617, 4
        %v2620 = vshll.u32 %v2429, 16
        %v2622 = vrot.slane %v2620, 5
        %v2623 = vsel %vm331, %v2618, %v2622
        %v2624 = vshrl.u32 %v2429, 16
        %v2626 = vrot.slane %v2624, 4
        %v2627 = vor.u32 %v2626, %v2622
        %v2628 = vrot.slane %v2627, 4
        %v2630 = vshll.u32 %v2487, 16
        %v2632 = vrot.slane %v2630, 5
        %v2633 = vsel %vm331, %v2628, %v2632
        %v2635 = vshrl.u32 %v2430, 16
        %v2637 = vrot.slane %v2635, 4
        %v2638 = vshll.u32 %v2430, 16
        %v2640 = vrot.slane %v2638, 5
        %v2641 = vor.u32 %v2637, %v2640
        %v2642 = vrot.slane %v2641, 4
        %v2644 = vshll.u32 %v2431, 16
        %v2646 = vrot.slane %v2644, 5
        %v2647 = vsel %vm331, %v2642, %v2646
        %v2648 = vshrl.u32 %v2431, 16
        %v2650 = vrot.slane %v2648, 4
        %v2651 = vor.u32 %v2650, %v2646
        %v2652 = vrot.slane %v2651, 4
        %v2654 = vshll.u32 %v2488, 16
        %v2656 = vrot.slane %v2654, 5
        %v2657 = vsel %vm331, %v2652, %v2656
        %v2659 = vshrl.u32 %v2432, 16
        %v2661 = vrot.slane %v2659, 4
        %v2662 = vshll.u32 %v2432, 16
        %v2664 = vrot.slane %v2662, 5
        %v2665 = vor.u32 %v2661, %v2664
        %v2666 = vrot.slane %v2665, 4
        %v2668 = vshll.u32 %v2433, 16
        %v2670 = vrot.slane %v2668, 5
        %v2671 = vsel %vm331, %v2666, %v2670
        %v2672 = vshrl.u32 %v2433, 16
        %v2674 = vrot.slane %v2672, 4
        %v2675 = vor.u32 %v2674, %v2670
        %v2676 = vrot.slane %v2675, 4
        %v2678 = vshll.u32 %v2489, 16
        %v2680 = vrot.slane %v2678, 5
        %v2681 = vsel %vm331, %v2676, %v2680
        %v2698 = vunpack.c.l.bf16 %v2503
        %v2699 = vunpack.c.l.bf16 %v2513
        %v2700 = vunpack.c.l.bf16 %v2527
        %v2701 = vunpack.c.l.bf16 %v2537
        %v2702 = vunpack.c.l.bf16 %v2551
        %v2703 = vunpack.c.l.bf16 %v2561
        %v2704 = vunpack.c.l.bf16 %v2575
        %v2705 = vunpack.c.l.bf16 %v2585
        %v2706 = vunpack.c.l.bf16 %v2599
        %v2707 = vunpack.c.l.bf16 %v2609
        %v2708 = vunpack.c.l.bf16 %v2623
        %v2709 = vunpack.c.l.bf16 %v2633
        %v2710 = vunpack.c.l.bf16 %v2647
        %v2711 = vunpack.c.l.bf16 %v2657
        %v2712 = vunpack.c.l.bf16 %v2671
        %v2713 = vunpack.c.l.bf16 %v2681
        %v2714 = vmul.f32 %v1465, %v2698
        %v2715 = vmul.f32 %v1471, %v2699
        %v2716 = vmul.f32 %v1477, %v2700
        %v2717 = vmul.f32 %v1483, %v2701
        %v2718 = vmul.f32 %v1489, %v2702
        %v2719 = vmul.f32 %v1495, %v2703
        %v2720 = vmul.f32 %v1501, %v2704
        %v2721 = vmul.f32 %v1507, %v2705
        %v2722 = vmul.f32 %v1513, %v2706
        %v2723 = vmul.f32 %v1519, %v2707
        %v2724 = vmul.f32 %v1525, %v2708
        %v2725 = vmul.f32 %v1531, %v2709
        %v2726 = vmul.f32 %v1537, %v2710
        %v2727 = vmul.f32 %v1543, %v2711
        %v2728 = vmul.f32 %v1549, %v2712
        %v2729 = vmul.f32 %v1555, %v2713
        %v2730 = vadd.f32 %v2466, %v2714
        %v2731 = vadd.f32 %v2467, %v2715
        %v2732 = vadd.f32 %v2468, %v2716
        %v2733 = vadd.f32 %v2469, %v2717
        %v2734 = vadd.f32 %v2470, %v2718
        %v2735 = vadd.f32 %v2471, %v2719
        %v2736 = vadd.f32 %v2472, %v2720
        %v2737 = vadd.f32 %v2473, %v2721
        %v2738 = vadd.f32 %v2474, %v2722
        %v2739 = vadd.f32 %v2475, %v2723
        %v2740 = vadd.f32 %v2476, %v2724
        %v2741 = vadd.f32 %v2477, %v2725
        %v2742 = vadd.f32 %v2478, %v2726
        %v2743 = vadd.f32 %v2479, %v2727
        %v2744 = vadd.f32 %v2480, %v2728
        %v2745 = vadd.f32 %v2481, %v2729
        %v2746 = vld [vmem:[%s2417] sm:$0xe]
        %v2747 = vld [vmem:[%s2417 + $0xc] sm:$0xe]
        %v2748 = vld [vmem:[%s2417 + $0x18] sm:$0xe]
        %v2749 = vld [vmem:[%s2417 + $0x24] sm:$0xe]
        %v2750 = vld [vmem:[%s2417 + $0x30] sm:$0xe]
        %v2751 = vld [vmem:[%s2417 + $0x3c] sm:$0xe]
        %v2752 = vld [vmem:[%s2417 + $0x48] sm:$0xe]
        %v2753 = vld [vmem:[%s2417 + $0x54] sm:$0xe]
        %v2778 = vrot.slane %v2746, 5
        %v2779 = vrot.slane %v2778, 4
        %v2780 = vrot.slane %v2419, 5
        %v2781 = vsel %vm2048, %v2779, %v2780
        %v2782 = vrot.slane %v2780, 4
        %v2783 = vrot.slane %v2482, 5
        %v2784 = vsel %vm2048, %v2782, %v2783
        %v2785 = vrot.slane %v2747, 5
        %v2786 = vrot.slane %v2785, 4
        %v2787 = vrot.slane %v2421, 5
        %v2788 = vsel %vm2048, %v2786, %v2787
        %v2789 = vrot.slane %v2787, 4
        %v2790 = vrot.slane %v2483, 5
        %v2791 = vsel %vm2048, %v2789, %v2790
        %v2792 = vrot.slane %v2748, 5
        %v2793 = vrot.slane %v2792, 4
        %v2794 = vrot.slane %v2423, 5
        %v2795 = vsel %vm2048, %v2793, %v2794
        %v2796 = vrot.slane %v2794, 4
        %v2797 = vrot.slane %v2484, 5
        %v2798 = vsel %vm2048, %v2796, %v2797
        %v2799 = vrot.slane %v2749, 5
        %v2800 = vrot.slane %v2799, 4
        %v2801 = vrot.slane %v2425, 5
        %v2802 = vsel %vm2048, %v2800, %v2801
        %v2803 = vrot.slane %v2801, 4
        %v2804 = vrot.slane %v2485, 5
        %v2805 = vsel %vm2048, %v2803, %v2804
        %v2806 = vrot.slane %v2750, 5
        %v2807 = vrot.slane %v2806, 4
        %v2808 = vrot.slane %v2427, 5
        %v2809 = vsel %vm2048, %v2807, %v2808
        %v2810 = vrot.slane %v2808, 4
        %v2811 = vrot.slane %v2486, 5
        %v2812 = vsel %vm2048, %v2810, %v2811
        %v2813 = vrot.slane %v2751, 5
        %v2814 = vrot.slane %v2813, 4
        %v2815 = vrot.slane %v2429, 5
        %v2816 = vsel %vm2048, %v2814, %v2815
        %v2817 = vrot.slane %v2815, 4
        %v2818 = vrot.slane %v2487, 5
        %v2819 = vsel %vm2048, %v2817, %v2818
        %v2820 = vrot.slane %v2752, 5
        %v2821 = vrot.slane %v2820, 4
        %v2822 = vrot.slane %v2431, 5
        %v2823 = vsel %vm2048, %v2821, %v2822
        %v2824 = vrot.slane %v2822, 4
        %v2825 = vrot.slane %v2488, 5
        %v2826 = vsel %vm2048, %v2824, %v2825
        %v2827 = vrot.slane %v2753, 5
        %v2828 = vrot.slane %v2827, 4
        %v2829 = vrot.slane %v2433, 5
        %v2830 = vsel %vm2048, %v2828, %v2829
        %v2831 = vrot.slane %v2829, 4
        %v2832 = vrot.slane %v2489, 5
        %v2833 = vsel %vm2048, %v2831, %v2832
        %v2850 = vunpack.c.l.bf16 %v2781
        %v2851 = vunpack.c.l.bf16 %v2784
        %v2852 = vunpack.c.l.bf16 %v2788
        %v2853 = vunpack.c.l.bf16 %v2791
        %v2854 = vunpack.c.l.bf16 %v2795
        %v2855 = vunpack.c.l.bf16 %v2798
        %v2856 = vunpack.c.l.bf16 %v2802
        %v2857 = vunpack.c.l.bf16 %v2805
        %v2858 = vunpack.c.l.bf16 %v2809
        %v2859 = vunpack.c.l.bf16 %v2812
        %v2860 = vunpack.c.l.bf16 %v2816
        %v2861 = vunpack.c.l.bf16 %v2819
        %v2862 = vunpack.c.l.bf16 %v2823
        %v2863 = vunpack.c.l.bf16 %v2826
        %v2864 = vunpack.c.l.bf16 %v2830
        %v2865 = vunpack.c.l.bf16 %v2833
        %v2866 = vmul.f32 %v1624, %v2850
        %v2867 = vmul.f32 %v1629, %v2851
        %v2868 = vmul.f32 %v1634, %v2852
        %v2869 = vmul.f32 %v1639, %v2853
        %v2870 = vmul.f32 %v1644, %v2854
        %v2871 = vmul.f32 %v1649, %v2855
        %v2872 = vmul.f32 %v1654, %v2856
        %v2873 = vmul.f32 %v1659, %v2857
        %v2874 = vmul.f32 %v1664, %v2858
        %v2875 = vmul.f32 %v1669, %v2859
        %v2876 = vmul.f32 %v1674, %v2860
        %v2877 = vmul.f32 %v1679, %v2861
        %v2878 = vmul.f32 %v1684, %v2862
        %v2879 = vmul.f32 %v1689, %v2863
        %v2880 = vmul.f32 %v1694, %v2864
        %v2881 = vmul.f32 %v1699, %v2865
        %v2882 = vadd.f32 %v2730, %v2866
        %v2883 = vadd.f32 %v2731, %v2867
        %v2884 = vadd.f32 %v2732, %v2868
        %v2885 = vadd.f32 %v2733, %v2869
        %v2886 = vadd.f32 %v2734, %v2870
        %v2887 = vadd.f32 %v2735, %v2871
        %v2888 = vadd.f32 %v2736, %v2872
        %v2889 = vadd.f32 %v2737, %v2873
        %v2890 = vadd.f32 %v2738, %v2874
        %v2891 = vadd.f32 %v2739, %v2875
        %v2892 = vadd.f32 %v2740, %v2876
        %v2893 = vadd.f32 %v2741, %v2877
        %v2894 = vadd.f32 %v2742, %v2878
        %v2895 = vadd.f32 %v2743, %v2879
        %v2896 = vadd.f32 %v2744, %v2880
        %v2897 = vadd.f32 %v2745, %v2881
        %v2898 = vld [vmem:[%s6] sm:$0x1]
        %v2900 = vlaneseq
        %v2901 = vshrl.u32 %v2900, 7
        %v2902 = vsub.s32 0, %v2901
        %v2903 = vrot.slane %v2898, %v2902
        %v2905 = vmul.f32 %v2882, %v2903
        %v2906 = vmul.f32 %v2883, %v2903
        %v2907 = vmul.f32 %v2884, %v2903
        %v2908 = vmul.f32 %v2885, %v2903
        %v2909 = vmul.f32 %v2886, %v2903
        %v2910 = vmul.f32 %v2887, %v2903
        %v2911 = vmul.f32 %v2888, %v2903
        %v2912 = vmul.f32 %v2889, %v2903
        %v2913 = vmul.f32 %v2890, %v2903
        %v2914 = vmul.f32 %v2891, %v2903
        %v2915 = vmul.f32 %v2892, %v2903
        %v2916 = vmul.f32 %v2893, %v2903
        %v2917 = vmul.f32 %v2894, %v2903
        %v2918 = vmul.f32 %v2895, %v2903
        %v2919 = vmul.f32 %v2896, %v2903
        %v2920 = vmul.f32 %v2897, %v2903
        %v2921 = vld [vmem:[%s7] sm:$0x1]
        %v2923 = vlaneseq
        %v2924 = vshrl.u32 %v2923, 7
        %v2925 = vsub.s32 0, %v2924
        %v2926 = vrot.slane %v2921, %v2925
        %v2928 = vadd.f32 %v2905, %v2926
        %v2929 = vadd.f32 %v2906, %v2926
        %v2930 = vadd.f32 %v2907, %v2926
        %v2931 = vadd.f32 %v2908, %v2926
        %v2932 = vadd.f32 %v2909, %v2926
        %v2933 = vadd.f32 %v2910, %v2926
        %v2934 = vadd.f32 %v2911, %v2926
        %v2935 = vadd.f32 %v2912, %v2926
        %v2936 = vadd.f32 %v2913, %v2926
        %v2937 = vadd.f32 %v2914, %v2926
        %v2938 = vadd.f32 %v2915, %v2926
        %v2939 = vadd.f32 %v2916, %v2926
        %v2940 = vadd.f32 %v2917, %v2926
        %v2941 = vadd.f32 %v2918, %v2926
        %v2942 = vadd.f32 %v2919, %v2926
        %v2943 = vadd.f32 %v2920, %v2926
        %v2944 = vmax.f32 %v2928, 0.0
        %v2945 = vmax.f32 %v2929, 0.0
        %v2946 = vmax.f32 %v2930, 0.0
        %v2947 = vmax.f32 %v2931, 0.0
        %v2948 = vmax.f32 %v2932, 0.0
        %v2949 = vmax.f32 %v2933, 0.0
        %v2950 = vmax.f32 %v2934, 0.0
        %v2951 = vmax.f32 %v2935, 0.0
        %v2952 = vmax.f32 %v2936, 0.0
        %v2953 = vmax.f32 %v2937, 0.0
        %v2954 = vmax.f32 %v2938, 0.0
        %v2955 = vmax.f32 %v2939, 0.0
        %v2956 = vmax.f32 %v2940, 0.0
        %v2957 = vmax.f32 %v2941, 0.0
        %v2958 = vmax.f32 %v2942, 0.0
        %v2959 = vmax.f32 %v2943, 0.0
        %2960 = vst [vmem:[%s298] sm:$0xff] %v2944
        %2961 = vst [vmem:[%s298 + $0x8] sm:$0xff] %v2945
        %2962 = vst [vmem:[%s298 + $0x10] sm:$0xff] %v2946
        %2963 = vst [vmem:[%s298 + $0x18] sm:$0xff] %v2947
        %2964 = vst [vmem:[%s298 + $0x20] sm:$0xff] %v2948
        %2965 = vst [vmem:[%s298 + $0x28] sm:$0xff] %v2949
        %2966 = vst [vmem:[%s298 + $0x30] sm:$0xff] %v2950
        %2967 = vst [vmem:[%s298 + $0x38] sm:$0xff] %v2951
        %2968 = vst [vmem:[%s298 + $0x40] sm:$0xff] %v2952
        %2969 = vst [vmem:[%s298 + $0x48] sm:$0xff] %v2953
        %2970 = vst [vmem:[%s298 + $0x50] sm:$0xff] %v2954
        %2971 = vst [vmem:[%s298 + $0x58] sm:$0xff] %v2955
        %2972 = vst [vmem:[%s298 + $0x60] sm:$0xff] %v2956
        %2973 = vst [vmem:[%s298 + $0x68] sm:$0xff] %v2957
        %2974 = vst [vmem:[%s298 + $0x70] sm:$0xff] %v2958
        %2975 = vst [vmem:[%s298 + $0x78] sm:$0xff] %v2959
        %s2976 = sand.u32 %s203, 1
        %s2977 = scalar_lea.sflag [#allocation3], %s2976
        %s2978 = sand.u32 %s203, 1
        %s2979 = smul.addr %s2978, 128
        %s2980 = scalar_lea.vmem [#allocation2], %s2979
        // Predicated region
        $region53: #{inv2d_relu.1} parent=51 // pred_check
          %p2981 = pneg %p213
        $region54: #{inv2d_relu.1} parent=51 // pred_check_branch
          %2983 = sbr.rel (%p2981) target = $region56
        $region55: #{inv2d_relu.1} parent=51 // pred_region
          %s2985 = ssub.s32 2048, 2048
          %2986 = vsyncadd %s2977, %s2985
          %s2987 = smul.addr %s22, 16
          %s2988 = smul.addr %s2987, 128
          %s2989 = scalar_lea.hbm %s8, %s2988
          %s2990 = sshll.u32 %s2980, 4
          %s2991 = int_to_ptr.vmem [resolvable:$true] %s2990
          %2996 = dma.vmem_to_hbm [thread:$0]  %s2991, 2048, %s2989, %s2977, 128, 128, 8
        $region56: #{inv2d_relu.1} parent=51 // pred_fallthru
          _
      $region52: #{inv2d_relu.1} parent=5 // pred_fallthru
        _
      %p2997 = scmp.le.s32.totalorder 2, %s17
      // Predicated region
      $region57: #{inv2d_relu.1} parent=5 // pred_check
        %p2998 = pneg %p2997
      $region58: #{inv2d_relu.1} parent=5 // pred_check_branch
        %3000 = sbr.rel (%p2998) target = $region60
      $region59: #{inv2d_relu.1} parent=5 // pred_region
        %s3001 = ssub.s32 %s17, 2
        // Predicated region
        $region61: #{inv2d_relu.1} parent=59 // pred_check
          %p3002 = pneg %p219
        $region62: #{inv2d_relu.1} parent=59 // pred_check_branch
          %3004 = sbr.rel (%p3002) target = $region64
        $region63: #{inv2d_relu.1} parent=59 // pred_region
          %s3005 = sand.u32 %s204, 1
          %s3006 = scalar_lea.sflag [#allocation3], %s3005
          %s3007 = sand.u32 %s204, 1
          %s3008 = smul.addr %s3007, 128
          %s3009 = scalar_lea.vmem [#allocation2], %s3008
          %3010 = dma.done %s3006, 2048
        $region64: #{inv2d_relu.1} parent=59 // pred_fallthru
          _
      $region60: #{inv2d_relu.1} parent=5 // pred_fallthru
        _
    $region6: #{inv2d_relu.1} parent=1 // loop_footer
      %s21 = sadd.s32 1, %s17
    $region7: #{inv2d_relu.1} parent=1 // loop_footer_branch
      %16 = sbr.rel target = $region3
    $region8: #{inv2d_relu.1} parent=1 // loop_exit
      _
    %3011 = vsyncpa [#allocation3], 1
    %s3012 = scalar_lea.sflag [#allocation3], 1
    %3013 = vsyncpa %s3012, 1

</llo_original>
